<compile_context>
chip_gen: v5e
topology: v5e:2x2
jax: 0.10.0
libtpu: 0.0.40
codegen_flags: <defaults>
</compile_context>

<pallas_src>
import math
import functools

import jax
import jax.numpy as jnp
from jax.experimental import pallas as pl
from jax.experimental.pallas import tpu as pltpu


# ----------------------------- Pallas kernel ------------------------------- #

def _ipa_attn_kernel(q_ref, k_ref, vc_ref, mq_ref, mk_ref, o_ref, *,
                     inf, n_real, exp_in_bf16):
    """One (batch, q-tile) grid step, all heads at once.

    q_ref : [1, H, tq, C]  bf16  (2*scale already folded into the projection)
    k_ref : [1, H, Np, C]  bf16
    vc_ref: [1, H, Np, D]  bf16  (D = C + 3*Pv; fused [v | v_pts], global frame)
    mq_ref: [1, tq, 1]     f32   query-row mask
    mk_ref: [1, 1,  Np]    f32   key-column mask (0 on padded columns)
    o_ref : [1, tq, H*D]   bf16  lane-contiguous, head-major features per row
    """
    H = q_ref.shape[1]
    Np = k_ref.shape[2]
    D = vc_ref.shape[3]

    q = q_ref[0]                                                   # [H, tq, C]
    k = k_ref[0]                                                   # [H, Np, C]

    # Additive mask bias rebuilt in-kernel (no B*N*N bias in HBM/VMEM inputs).
    bias = inf * (mq_ref[0] * mk_ref[0] - 1.0)                     # [tq, Np]
    if Np > n_real:
        # Padded key columns must stay excluded even for fully-masked query
        # rows: their uniform -inf row bias cancels inside softmax (matching
        # the reference over the real keys), so only true padding gets the
        # extra -2*inf penalty.
        col = jax.lax.broadcasted_iota(jnp.int32, (1, Np), 1)
        bias = bias + jnp.where(col < n_real, 0.0, -2.0 * inf)

    # logits = 2*scale*(q k^T) + bias ; contract last dims (no k transpose).
    logits = jax.lax.dot_general(
        q, k, dimension_numbers=(((2,), (2,)), ((0,), (0,))),
        preferred_element_type=jnp.float32)                        # [H, tq, Np]
    logits = logits + bias[None, :, :]

    # Softmax with deferred normalization (one EUP reciprocal per row).
    m = jnp.max(logits, axis=-1, keepdims=True)
    x = logits - m
    if exp_in_bf16:
        # v6e/v7x: bf16 EUP (~2x exp throughput) + drops the f32->bf16 cast.
        e_mm = jnp.exp(x.astype(jnp.bfloat16))
        denom = jnp.sum(e_mm, axis=-1, keepdims=True, dtype=jnp.float32)
    else:
        e = jnp.exp(x)
        denom = jnp.sum(e, axis=-1, keepdims=True)                 # [H, tq, 1]
        e_mm = e.astype(vc_ref.dtype)

    # Single fused value matmul (bf16 operands, f32 accumulation).
    o = jax.lax.dot_general(
        e_mm, vc_ref[0], dimension_numbers=(((2,), (1,)), ((0,), (0,))),
        preferred_element_type=jnp.float32)                        # [H, tq, D]
    o = (o * pl.reciprocal(denom, approx=True)).astype(o_ref.dtype)

    # Head-major -> lane-contiguous [tq, H*D] write.  Per-head static-slice
    # stores fuse the former wrapper transpose into the kernel (XLU slack)
    # without needing an in-kernel reshape, and keep the output block's last
    # dim at H*D instead of D.
    for h in range(H):
        o_ref[0, :, pl.ds(h * D, D)] = o[h]


# --------------------------- tiling / VMEM heuristics ----------------------- #

def _round_up(x, m):
    return (x + m - 1) // m * m


def _default_vmem_limit_bytes():
    """~85% of physical VMEM, capped at 110 MiB.

    v5e/v6e (128 MiB) -> ~109 MiB; v7x (64 MiB) -> ~54 MiB; unknown -> ~54 MiB.
    """
    cap = 64 * 1024 * 1024  # conservative fallback (v7x-sized)
    try:
        cap = int(pltpu.get_tpu_info().vmem_capacity_bytes)
    except Exception:
        pass
    return min(110 * 1024 * 1024, int(cap * 0.85))


def _pick_q_block(np_keys, h, c, d, vmem_limit_bytes, target=512):
    """Largest q-tile whose footprint (double-buffered blocks + in-kernel
    [H,tq,Np] f32 softmax intermediates) fits ~75% of the scoped VMEM limit.

    Never below 16 (bf16 sublane minimum); np_keys is a multiple of 128 so
    every candidate divides it.
    """
    budget = 0.75 * vmem_limit_bytes
    cands = [t for t in (512, 256, 128, 64, 32, 16)
             if t <= max(16, target) and t <= np_keys and np_keys % t == 0]
    # k / vc blocks are resident per batch step (block index depends only on b).
    fixed = 2 * (h * np_keys * c * 2 + h * np_keys * d * 2) + 2 * np_keys * 4
    for tq in cands:
        blocks = 2 * (h * tq * c * 2 + tq * h * d * 2 + tq * 4)
        inter = (h * tq * np_keys * (4 + 4 + 2)      # logits f32, exp f32, exp bf16
                 + tq * np_keys * 4                  # bias
                 + h * tq * d * 4)                   # f32 value-matmul result
        if fixed + blocks + inter <= budget:
            return tq
    # TODO(synk): for very large N even tq=16 (or the resident k/vc blocks)
    # may not fit -> switch to a flash-style key-tiled grid with online softmax.
    return cands[-1] if cands else 16


# ------------------------------ pallas_call wrapper ------------------------- #

def ipa_attention_core(q, k, vc, mask, inf, *, q_block_target=512,
                       out_dtype=jnp.bfloat16, exp_in_bf16=False,
                       vmem_limit_bytes=None):
    """q,k: [B,H,N,C] bf16; vc: [B,H,N,D] bf16; mask: [B,N] f32.

    Returns oc: [B, N, H, D] float32 (fused [o | o_pt(global frame)]).
    """
    B, H, N, C = q.shape
    D = vc.shape[-1]
    HD = H * D

    if vmem_limit_bytes is None:
        vmem_limit_bytes = _default_vmem_limit_bytes()

    # Pad keys/queries to a lane-aligned count; padded columns are neutralized
    # in-kernel, padded query rows are sliced off below.
    Np = _round_up(N, 128)
    tq = _pick_q_block(Np, H, C, D, vmem_limit_bytes, target=q_block_target)
    nq = Np // tq

    if Np != N:
        pad = Np - N
        q = jnp.pad(q, ((0, 0), (0, 0), (0, pad), (0, 0)))
        k = jnp.pad(k, ((0, 0), (0, 0), (0, pad), (0, 0)))
        vc = jnp.pad(vc, ((0, 0), (0, 0), (0, pad), (0, 0)))
        mask = jnp.pad(mask, ((0, 0), (0, pad)))

    mask_q = mask.reshape(B, Np, 1).astype(jnp.float32)   # O(B*N), not O(B*N^2)
    mask_k = mask.reshape(B, 1, Np).astype(jnp.float32)

    kernel = functools.partial(_ipa_attn_kernel, inf=inf, n_real=N,
                               exp_in_bf16=exp_in_bf16)

    out_itemsize = jnp.dtype(out_dtype).itemsize
    cost = pl.CostEstimate(
        flops=int(2 * B * H * Np * Np * (C + D)),
        transcendentals=int(B * H * Np * Np),
        bytes_accessed=int(2 * B * H * Np * C * 2 + B * H * Np * D * 2
                           + 2 * B * Np * 4 + B * Np * HD * out_itemsize))

    out = pl.pallas_call(
        kernel,
        out_shape=jax.ShapeDtypeStruct((B, Np, HD), out_dtype),
        grid=(B, nq),
        in_specs=[
            pl.BlockSpec((1, H, tq, C), lambda b, qi: (b, 0, qi, 0)),
            # k / v_cat blocks depend only on b -> not re-DMA'd across q tiles.
            pl.BlockSpec((1, H, Np, C), lambda b, qi: (b, 0, 0, 0)),
            pl.BlockSpec((1, H, Np, D), lambda b, qi: (b, 0, 0, 0)),
            pl.BlockSpec((1, tq, 1), lambda b, qi: (b, qi, 0)),
            pl.BlockSpec((1, 1, Np), lambda b, qi: (b, 0, 0)),
        ],
        out_specs=pl.BlockSpec((1, tq, HD), lambda b, qi: (b, qi, 0)),
        compiler_params=pltpu.CompilerParams(
            dimension_semantics=("parallel", "parallel"),
            vmem_limit_bytes=int(vmem_limit_bytes)),
        cost_estimate=cost,
    )(q, k, vc, mask_q, mask_k)

    # Slice off padded query rows; the [B,N,HD] -> [B,N,H,D] reshape is free
    # (layout-compatible) and the f32 upcast fuses into downstream consumers.
    return out[:, :N, :].reshape(B, N, H, D).astype(jnp.float32)


# ------------------------------ Module glue -------------------------------- #

def init_params(key, c_s, c_hidden, no_heads, no_v_points):
    hc = c_hidden * no_heads
    hpv = no_heads * no_v_points * 3
    concat = no_heads * (c_hidden + no_v_points * 4)
    ks = jax.random.split(key, 4)

    def lin(k, fan_in, fan_out):
        return 0.1 * jax.random.normal(k, (fan_in, fan_out), jnp.float32)

    # linear_g_q / linear_g_k exist in the PyTorch module but their outputs are
    # never used in forward (dead code), so they are omitted here.
    # linear_out has init='final' (zeros) in the original; random init keeps
    # the synthetic output non-trivial.
    return dict(
        w_q=lin(ks[0], c_s, hc), b_q=jnp.zeros((hc,), jnp.float32),
        w_kv=lin(ks[1], c_s, 2 * hc), b_kv=jnp.zeros((2 * hc,), jnp.float32),
        w_vp=lin(ks[2], c_s, hpv), b_vp=jnp.zeros((hpv,), jnp.float32),
        w_out=lin(ks[3], concat, c_s), b_out=jnp.zeros((c_s,), jnp.float32),
    )


def random_rigid(key, B, N):
    """Random rotation matrices (via unit quaternions) + translations."""
    kq, kt = jax.random.split(key)
    quat = jax.random.normal(kq, (B, N, 4), jnp.float32)
    quat = quat / jnp.linalg.norm(quat, axis=-1, keepdims=True)
    w, x, y, z = quat[..., 0], quat[..., 1], quat[..., 2], quat[..., 3]
    rot = jnp.stack([
        jnp.stack([1 - 2 * (y * y + z * z), 2 * (x * y - w * z), 2 * (x * z + w * y)], -1),
        jnp.stack([2 * (x * y + w * z), 1 - 2 * (x * x + z * z), 2 * (y * z - w * x)], -1),
        jnp.stack([2 * (x * z - w * y), 2 * (y * z + w * x), 1 - 2 * (x * x + y * y)], -1),
    ], axis=-2)                                             # [B, N, 3, 3]
    trans = jax.random.normal(kt, (B, N, 3), jnp.float32)   # [B, N, 3]
    return rot, trans


def tmp_attention3_forward(params, s, z, rot, trans, mask, *,
                           c_hidden, no_heads, no_v_points,
                           inf=1e5, eps=1e-8, use_pallas=True):
    del z  # unused by the reference forward
    B, N, c_s = s.shape
    H, C, Pv = no_heads, c_hidden, no_v_points
    f32 = jnp.float32

    # a + a_g in the reference == 2*scale*(q k^T); fold 2*scale into the q
    # projection (one-time O(c_s*H*C)) so the kernel never rescales q.
    scale = math.sqrt(1.0 / (3 * C))
    qscale = 2.0 * scale

    # Projections emitted head-major directly (weights are reshaped, not the
    # big activations -> no standalone [B,N,H,*] -> [B,H,N,*] transposes).
    w_q = (params["w_q"] * qscale).reshape(c_s, H, C).transpose(1, 0, 2)   # [H,c_s,C]
    b_q = (params["b_q"] * qscale).reshape(H, 1, C)
    q_h = jnp.einsum("bnc,hcd->bhnd", s, w_q) + b_q                        # [B,H,N,C]

    w_kv = params["w_kv"].reshape(c_s, H, 2 * C).transpose(1, 0, 2)        # [H,c_s,2C]
    b_kv = params["b_kv"].reshape(H, 1, 2 * C)
    kv_h = jnp.einsum("bnc,hcd->bhnd", s, w_kv) + b_kv                     # [B,H,N,2C]
    k_h, v_h = kv_h[..., :C], kv_h[..., C:]

    # Value points, head-major, rotated/translated into the global frame.
    # PyTorch column layout of linear_v_points output is [coord(3), head, point].
    w_vp = params["w_vp"].reshape(c_s, 3, H, Pv).transpose(2, 0, 3, 1)     # [H,c_s,Pv,3]
    b_vp = params["b_vp"].reshape(3, H, Pv).transpose(1, 2, 0)             # [H,Pv,3]
    vp_h = jnp.einsum("bnc,hcpk->bhnpk", s, w_vp) + b_vp[:, None]          # [B,H,N,Pv,3]
    vp_h = jnp.einsum("bnij,bhnpj->bhnpi", rot, vp_h) + trans[:, None, :, None, :]
    vp_h = vp_h.reshape(B, H, N, Pv * 3)

    # Fused value operand [v | v_pts] -> single a @ v_cat matmul in the kernel.
    v_cat = jnp.concatenate([v_h, vp_h], axis=-1)                          # [B,H,N,C+3Pv]

    # bf16 MXU operands (accumulation stays f32 inside the kernel).
    q_bf = q_h.astype(jnp.bfloat16)
    k_bf = k_h.astype(jnp.bfloat16)
    vc_bf = v_cat.astype(jnp.bfloat16)
    mask_f = mask.astype(f32)

    if use_pallas:
        # TODO(synk): set exp_in_bf16=True on v6e/v7x for bf16-EUP softmax exp.
        oc = ipa_attention_core(q_bf, k_bf, vc_bf, mask_f, inf)            # [B,N,H,D] f32
    else:
        bias = inf * (mask_f[:, :, None] * mask_f[:, None, :] - 1.0)
        qf, kf, vcf = (t.astype(f32) for t in (q_bf, k_bf, vc_bf))
        logits = jnp.einsum("bhic,bhjc->bhij", qf, kf,
                            precision=jax.lax.Precision.HIGHEST)           # scale folded
        logits = logits + bias[:, None, :, :]
        a = jax.nn.softmax(logits, axis=-1)
        oc_h = jnp.einsum("bhij,bhjd->bhid", a, vcf,
                          precision=jax.lax.Precision.HIGHEST)
        oc = jnp.transpose(oc_h, (0, 2, 1, 3))                             # [B,N,H,D]

    # split fused output: o [B,N,H*C], o_pt [B,N,H,Pv,3]
    o = oc[..., :C].reshape(B, N, H * C)
    o_pt = oc[..., C:].reshape(B, N, H, Pv, 3)

    # invert-apply the rigid transform
    o_pt = jnp.einsum("bnji,bnhpj->bnhpi", rot, o_pt - trans[:, :, None, None, :])

    o_pt_norm = jnp.sqrt(jnp.sum(o_pt ** 2, axis=-1) + eps).reshape(B, N, H * Pv)
    o_pt_flat = o_pt.reshape(B, N, H * Pv, 3)

    cat = jnp.concatenate(
        [o, o_pt_flat[..., 0], o_pt_flat[..., 1], o_pt_flat[..., 2], o_pt_norm],
        axis=-1)                                                           # [B,N,H*(C+4Pv)]
    return cat @ params["w_out"] + params["b_out"]                         # [B,N,c_s]


# --------------------------------- main ------------------------------------ #

if __name__ == "__main__":
    # small, module-consistent shapes
    B, N = 2, 8
    c_s, c_z = 32, 16
    c_hidden, no_heads = 16, 4
    no_qk_points, no_v_points = 4, 8   # no_qk_points is unused by the forward

    key = jax.random.PRNGKey(0)
    k_par, k_s, k_z, k_r, k_m = jax.random.split(key, 5)

    params = init_params(k_par, c_s, c_hidden, no_heads, no_v_points)

    s = jax.random.normal(k_s, (B, N, c_s), jnp.float32)
    z = jax.random.normal(k_z, (B, N, N, c_z), jnp.float32)   # unused by forward
    rot, trans = random_rigid(k_r, B, N)
    mask = jnp.ones((B, N), jnp.float32).at[0, -1].set(0.0).at[1, 0].set(0.0)

    out = tmp_attention3_forward(
        params, s, z, rot, trans, mask,
        c_hidden=c_hidden, no_heads=no_heads, no_v_points=no_v_points,
        use_pallas=True)
    out = jax.block_until_ready(out)

    # sanity check against a pure-JAX reference of the same math
    ref = tmp_attention3_forward(
        params, s, z, rot, trans, mask,
        c_hidden=c_hidden, no_heads=no_heads, no_v_points=no_v_points,
        use_pallas=False)
    ref = jax.block_until_ready(ref)

    assert out.shape == (B, N, c_s)
    assert bool(jnp.all(jnp.isfinite(out)))
    # bf16 kernel output + bf16 MXU operands + approx reciprocal vs f32 HIGHEST ref
    if not jnp.allclose(out, ref, atol=3e-2, rtol=3e-2):
        raise AssertionError("Pallas kernel output mismatch vs JAX reference")

    print("KERNEL_OK")
</pallas_src>

<mosaic_0001>
module attributes {stable_mosaic.version = 11 : i64} {
  func.func @_ipa_attn_kernel(%arg0: i32, %arg1: i32, %arg2: memref<1x4x128x16xbf16, #tpu.memory_space<vmem>>, %arg3: memref<1x4x128x16xbf16, #tpu.memory_space<vmem>>, %arg4: memref<1x4x128x40xbf16, #tpu.memory_space<vmem>>, %arg5: memref<1x128x1xf32, #tpu.memory_space<vmem>>, %arg6: memref<1x1x128xf32, #tpu.memory_space<vmem>>, %arg7: memref<1x128x160xbf16, #tpu.memory_space<vmem>>) attributes {dimension_semantics = [#tpu.dimension_semantics<parallel>, #tpu.dimension_semantics<parallel>], iteration_bounds = array<i64: 2, 1>, scalar_prefetch = 0 : i64, scratch_operands = 0 : i64, tpu.core_type = #tpu.core_type<tc>, window_params = [{transform_indices = @transform_0, window_bounds = array<i64: 1, 4, 128, 16>}, {transform_indices = @transform_1, window_bounds = array<i64: 1, 4, 128, 16>}, {transform_indices = @transform_2, window_bounds = array<i64: 1, 4, 128, 40>}, {transform_indices = @transform_3, window_bounds = array<i64: 1, 128, 1>}, {transform_indices = @transform_4, window_bounds = array<i64: 1, 1, 128>}, {transform_indices = @transform_5, window_bounds = array<i64: 1, 128, 160>}]} {
    %c0 = arith.constant 0 : index
    %c0_0 = arith.constant 0 : index
    %c0_1 = arith.constant 0 : index
    %c0_2 = arith.constant 0 : index
    %0 = vector.load %arg2[%c0, %c0_0, %c0_1, %c0_2] : memref<1x4x128x16xbf16, #tpu.memory_space<vmem>>, vector<1x4x128x16xbf16>
    %1 = vector.shape_cast %0 : vector<1x4x128x16xbf16> to vector<4x128x16xbf16>
    %c0_3 = arith.constant 0 : index
    %c0_4 = arith.constant 0 : index
    %c0_5 = arith.constant 0 : index
    %c0_6 = arith.constant 0 : index
    %2 = vector.load %arg3[%c0_3, %c0_4, %c0_5, %c0_6] : memref<1x4x128x16xbf16, #tpu.memory_space<vmem>>, vector<1x4x128x16xbf16>
    %3 = vector.shape_cast %2 : vector<1x4x128x16xbf16> to vector<4x128x16xbf16>
    %c0_7 = arith.constant 0 : index
    %c0_8 = arith.constant 0 : index
    %c0_9 = arith.constant 0 : index
    %4 = vector.load %arg5[%c0_7, %c0_8, %c0_9] : memref<1x128x1xf32, #tpu.memory_space<vmem>>, vector<1x128x1xf32>
    %5 = vector.shape_cast %4 : vector<1x128x1xf32> to vector<128x1xf32>
    %c0_10 = arith.constant 0 : index
    %c0_11 = arith.constant 0 : index
    %c0_12 = arith.constant 0 : index
    %6 = vector.load %arg6[%c0_10, %c0_11, %c0_12] : memref<1x1x128xf32, #tpu.memory_space<vmem>>, vector<1x1x128xf32>
    %7 = vector.shape_cast %6 : vector<1x1x128xf32> to vector<1x128xf32>
    %8 = vector.broadcast %5 : vector<128x1xf32> to vector<128x128xf32>
    %9 = vector.broadcast %7 : vector<1x128xf32> to vector<128x128xf32>
    %10 = arith.mulf %8, %9 : vector<128x128xf32>
    %cst = arith.constant 1.000000e+00 : f32
    %11 = vector.broadcast %cst : f32 to vector<128x128xf32>
    %12 = arith.subf %10, %11 : vector<128x128xf32>
    %cst_13 = arith.constant 1.000000e+05 : f32
    %13 = vector.broadcast %cst_13 : f32 to vector<128x128xf32>
    %14 = arith.mulf %13, %12 : vector<128x128xf32>
    %15 = tpu.iota {dimensions = array<i32: 1>} : vector<1x128xi32>
    %c8_i32 = arith.constant 8 : i32
    %16 = vector.broadcast %c8_i32 : i32 to vector<1x128xi32>
    %17 = arith.cmpi slt, %15, %16 : vector<1x128xi32>
    %cst_14 = arith.constant 0.000000e+00 : f32
    %cst_15 = arith.constant -2.000000e+05 : f32
    %18 = vector.broadcast %cst_14 : f32 to vector<1x128xf32>
    %19 = vector.broadcast %cst_15 : f32 to vector<1x128xf32>
    %20 = arith.select %17, %18, %19 : vector<1x128xi1>, vector<1x128xf32>
    %21 = vector.broadcast %20 : vector<1x128xf32> to vector<128x128xf32>
    %22 = arith.addf %14, %21 : vector<128x128xf32>
    %cst_16 = arith.constant dense<0.000000e+00> : vector<4x128x128xf32>
    %23 = tpu.matmul %1, %3, %cst_16 {dimension_numbers = #tpu.dot_dimension_numbers<[2], [2], [1], [1], [0, 0, 0, 1, 1, 1], [0], [0]>} : vector<4x128x16xbf16>, vector<4x128x16xbf16>, vector<4x128x128xf32> -> vector<4x128x128xf32>
    %24 = vector.shape_cast %22 : vector<128x128xf32> to vector<1x128x128xf32>
    %25 = vector.broadcast %24 : vector<1x128x128xf32> to vector<4x128x128xf32>
    %26 = arith.addf %23, %25 : vector<4x128x128xf32>
    %cst_17 = arith.constant dense<0xFF800000> : vector<4x128xf32>
    %27 = vector.multi_reduction <maximumf>, %26, %cst_17 [2] : vector<4x128x128xf32> to vector<4x128xf32>
    %28 = vector.shape_cast %27 : vector<4x128xf32> to vector<4x128x1xf32>
    %29 = vector.broadcast %28 : vector<4x128x1xf32> to vector<4x128x128xf32>
    %30 = arith.subf %26, %29 : vector<4x128x128xf32>
    %31 = math.exp %30 : vector<4x128x128xf32>
    %cst_18 = arith.constant dense<0.000000e+00> : vector<4x128xf32>
    %32 = vector.multi_reduction <add>, %31, %cst_18 [2] : vector<4x128x128xf32> to vector<4x128xf32>
    %33 = vector.shape_cast %32 : vector<4x128xf32> to vector<4x128x1xf32>
    %34 = arith.truncf %31 : vector<4x128x128xf32> to vector<4x128x128xbf16>
    %c0_19 = arith.constant 0 : index
    %c0_20 = arith.constant 0 : index
    %c0_21 = arith.constant 0 : index
    %c0_22 = arith.constant 0 : index
    %35 = vector.load %arg4[%c0_19, %c0_20, %c0_21, %c0_22] : memref<1x4x128x40xbf16, #tpu.memory_space<vmem>>, vector<1x4x128x40xbf16>
    %36 = vector.shape_cast %35 : vector<1x4x128x40xbf16> to vector<4x128x40xbf16>
    %cst_23 = arith.constant dense<0.000000e+00> : vector<4x128x40xf32>
    %37 = tpu.matmul %34, %36, %cst_23 {dimension_numbers = #tpu.dot_dimension_numbers<[2], [1], [1], [2], [0, 0, 0, 1, 1, 2], [0], [0]>} : vector<4x128x128xbf16>, vector<4x128x40xbf16>, vector<4x128x40xf32> -> vector<4x128x40xf32>
    %38 = tpu.reciprocal %33 {approx = true} : vector<4x128x1xf32> -> vector<4x128x1xf32>
    %39 = vector.broadcast %38 : vector<4x128x1xf32> to vector<4x128x40xf32>
    %40 = arith.mulf %37, %39 : vector<4x128x40xf32>
    %41 = arith.truncf %40 : vector<4x128x40xf32> to vector<4x128x40xbf16>
    %42 = vector.extract_strided_slice %41 {offsets = [0, 0, 0], sizes = [1, 128, 40], strides = [1, 1, 1]} : vector<4x128x40xbf16> to vector<1x128x40xbf16>
    %43 = vector.shape_cast %42 : vector<1x128x40xbf16> to vector<128x40xbf16>
    %c0_24 = arith.constant 0 : index
    %c0_25 = arith.constant 0 : index
    %c0_26 = arith.constant 0 : index
    %44 = vector.load %arg7[%c0_24, %c0_25, %c0_26] : memref<1x128x160xbf16, #tpu.memory_space<vmem>>, vector<1x128x40xbf16>
    %45 = vector.shape_cast %44 : vector<1x128x40xbf16> to vector<128x40xbf16>
    %46 = vector.shape_cast %43 : vector<128x40xbf16> to vector<1x128x40xbf16>
    tpu.vector_store %arg7[%c0_24, %c0_25, %c0_26], %46 {strides = array<i32>} : memref<1x128x160xbf16, #tpu.memory_space<vmem>>, vector<1x128x40xbf16>,
    %47 = vector.extract_strided_slice %41 {offsets = [1, 0, 0], sizes = [1, 128, 40], strides = [1, 1, 1]} : vector<4x128x40xbf16> to vector<1x128x40xbf16>
    %48 = vector.shape_cast %47 : vector<1x128x40xbf16> to vector<128x40xbf16>
    %c0_27 = arith.constant 0 : index
    %c0_28 = arith.constant 0 : index
    %c40 = arith.constant 40 : index
    %49 = vector.load %arg7[%c0_27, %c0_28, %c40] : memref<1x128x160xbf16, #tpu.memory_space<vmem>>, vector<1x128x40xbf16>
    %50 = vector.shape_cast %49 : vector<1x128x40xbf16> to vector<128x40xbf16>
    %51 = vector.shape_cast %48 : vector<128x40xbf16> to vector<1x128x40xbf16>
    tpu.vector_store %arg7[%c0_27, %c0_28, %c40], %51 {strides = array<i32>} : memref<1x128x160xbf16, #tpu.memory_space<vmem>>, vector<1x128x40xbf16>,
    %52 = vector.extract_strided_slice %41 {offsets = [2, 0, 0], sizes = [1, 128, 40], strides = [1, 1, 1]} : vector<4x128x40xbf16> to vector<1x128x40xbf16>
    %53 = vector.shape_cast %52 : vector<1x128x40xbf16> to vector<128x40xbf16>
    %c0_29 = arith.constant 0 : index
    %c0_30 = arith.constant 0 : index
    %c80 = arith.constant 80 : index
    %54 = vector.load %arg7[%c0_29, %c0_30, %c80] : memref<1x128x160xbf16, #tpu.memory_space<vmem>>, vector<1x128x40xbf16>
    %55 = vector.shape_cast %54 : vector<1x128x40xbf16> to vector<128x40xbf16>
    %56 = vector.shape_cast %53 : vector<128x40xbf16> to vector<1x128x40xbf16>
    tpu.vector_store %arg7[%c0_29, %c0_30, %c80], %56 {strides = array<i32>} : memref<1x128x160xbf16, #tpu.memory_space<vmem>>, vector<1x128x40xbf16>,
    %57 = vector.extract_strided_slice %41 {offsets = [3, 0, 0], sizes = [1, 128, 40], strides = [1, 1, 1]} : vector<4x128x40xbf16> to vector<1x128x40xbf16>
    %58 = vector.shape_cast %57 : vector<1x128x40xbf16> to vector<128x40xbf16>
    %c0_31 = arith.constant 0 : index
    %c0_32 = arith.constant 0 : index
    %c120 = arith.constant 120 : index
    %59 = vector.load %arg7[%c0_31, %c0_32, %c120] : memref<1x128x160xbf16, #tpu.memory_space<vmem>>, vector<1x128x40xbf16>
    %60 = vector.shape_cast %59 : vector<1x128x40xbf16> to vector<128x40xbf16>
    %61 = vector.shape_cast %58 : vector<128x40xbf16> to vector<1x128x40xbf16>
    tpu.vector_store %arg7[%c0_31, %c0_32, %c120], %61 {strides = array<i32>} : memref<1x128x160xbf16, #tpu.memory_space<vmem>>, vector<1x128x40xbf16>,
    return
  }
  func.func @transform_0(%arg0: i32, %arg1: i32) -> (i32, i32, i32, i32) {
    %c0_i32 = arith.constant 0 : i32
    %c0_i32_0 = arith.constant 0 : i32
    %c0_i32_1 = arith.constant 0 : i32
    return %arg0, %c0_i32, %arg1, %c0_i32_0 : i32, i32, i32, i32
  }
  func.func @transform_1(%arg0: i32, %arg1: i32) -> (i32, i32, i32, i32) {
    %c0_i32 = arith.constant 0 : i32
    %c0_i32_0 = arith.constant 0 : i32
    %c0_i32_1 = arith.constant 0 : i32
    %c0_i32_2 = arith.constant 0 : i32
    return %arg0, %c0_i32, %c0_i32_0, %c0_i32_1 : i32, i32, i32, i32
  }
  func.func @transform_2(%arg0: i32, %arg1: i32) -> (i32, i32, i32, i32) {
    %c0_i32 = arith.constant 0 : i32
    %c0_i32_0 = arith.constant 0 : i32
    %c0_i32_1 = arith.constant 0 : i32
    %c0_i32_2 = arith.constant 0 : i32
    return %arg0, %c0_i32, %c0_i32_0, %c0_i32_1 : i32, i32, i32, i32
  }
  func.func @transform_3(%arg0: i32, %arg1: i32) -> (i32, i32, i32) {
    %c0_i32 = arith.constant 0 : i32
    %c0_i32_0 = arith.constant 0 : i32
    return %arg0, %arg1, %c0_i32 : i32, i32, i32
  }
  func.func @transform_4(%arg0: i32, %arg1: i32) -> (i32, i32, i32) {
    %c0_i32 = arith.constant 0 : i32
    %c0_i32_0 = arith.constant 0 : i32
    %c0_i32_1 = arith.constant 0 : i32
    return %arg0, %c0_i32, %c0_i32_0 : i32, i32, i32
  }
  func.func @transform_5(%arg0: i32, %arg1: i32) -> (i32, i32, i32) {
    %c0_i32 = arith.constant 0 : i32
    %c0_i32_0 = arith.constant 0 : i32
    return %arg0, %arg1, %c0_i32 : i32, i32, i32
  }
}

</mosaic_0001>

<llo_original>
// kernel: tpu_custom_call.1
$region0: #{tpu_custom_call.1}
  #allocation0 [shape = 'u32[]', space=smem, size = 0x4, offset = 0x4, fixed_abs, tag = 'smem constant byte address 0x4 - core index']
  #allocation1 [shape = 'u32[72,128]{1,0:T(1,128)}', space=vmem, size = 0x9000, scoped, tag = 'internal scratch']
  %s0 = inlined_call_operand.vmem [shape: bf16[2,4,128,16], index: 0, kind: input, shape index: {}]
  %s1 = inlined_call_operand.vmem [shape: bf16[2,4,128,16], index: 1, kind: input, shape index: {}]
  %s2 = inlined_call_operand.vmem [shape: bf16[2,4,128,40], index: 2, kind: input, shape index: {}]
  %s3 = inlined_call_operand.vmem [shape: f32[2,128,1], index: 3, kind: input, shape index: {}]
  %s4 = inlined_call_operand.vmem [shape: f32[2,1,128], index: 4, kind: input, shape index: {}]
  %s5 = inlined_call_operand.vmem [shape: bf16[2,128,160], index: 5, kind: output, shape index: {}]
  %s6 = sld [smem:[#allocation0]]
  $region53: #{tpu_custom_call.1} parent=0
    _
  %s8 = ssub.s32 1, %s6
  %s9 = scalar_select 0, %s8, %s6
  loop: start=0, step=1, limit=4
  $region2: #{tpu_custom_call.1} parent=0 // loop_pre_header
    _
  $region3: #{tpu_custom_call.1} parent=0 // loop_header
    %s11 = sphi 0, %s15
    %p12 = scmp.ge.s32.totalorder %s11, 4
    %s18 = sphi 0, %s30
    %s19 = sphi 0, %s26
    %s20 = sphi 0, %s18
    %s21 = sphi 0, %s19
    %s22 = sphi 0, %s20
    %s23 = sphi 0, %s21
    %s35 = sphi 0, %s37
    %s38 = sphi 0, %s35
    %s39 = sphi 0, %s38
    %s55 = sphi 0, %s39
    %s61 = sphi 0, %s63
    %s64 = sphi 0, %s61
    %s65 = sphi 0, %s64
    %s81 = sphi 0, %s65
    %s87 = sphi 0, %s89
    %s90 = sphi 0, %s87
    %s91 = sphi 0, %s90
    %s107 = sphi 0, %s91
    %s115 = sphi 0, %s117
    %s118 = sphi 0, %s115
    %s119 = sphi 0, %s118
    %s135 = sphi 0, %s119
    %s141 = sphi 0, %s143
    %s144 = sphi 0, %s141
    %s145 = sphi 0, %s144
    %s161 = sphi 0, %s145
    %s169 = sphi 0, %s171
    %s172 = sphi 0, %s169
    %s173 = sphi 0, %s172
    %s189 = sphi 0, %s173
  $region4: #{tpu_custom_call.1} parent=0 // loop_header_branch
    %14 = sbr.rel (%p12) target = $region8
  $region5: #{tpu_custom_call.1} parent=0 // loop_body
    %s16 = ssub.s32 %s11, 1
    %s17 = ssub.s32 %s11, 2
    %s24 = sadd.s32 1, %s19
    %p25 = scmp.ge.s32.totalorder %s24, 1
    %s26 = scalar_select %p25, 0, %s24
    %s27 = sadd.s32 1, %s18
    %s28 = scalar_select %p25, %s27, %s18
    %p29 = scmp.ge.s32.totalorder %s28, 2
    %s30 = scalar_select %p29, 0, %s28
    %s31 = ssub.s32 %s18, %s30
    %s32 = ssub.s32 %s19, %s26
    %s33 = sor.u32 %s31, %s32
    %p34 = scmp.eq.s32.totalorder %s33, 0
    %s36 = sadd.s32 %s35, 1
    %s37 = scalar_select %p34, %s35, %s36
    %p40 = pneg %p34
    %p41 = scmp.eq.s32.totalorder %s11, 1
    %p42 = por %p40, %p41
    %p43 = scmp.ne.s32.totalorder %s35, %s38
    %p44 = scmp.eq.s32.totalorder %s11, 0
    %p45 = por %p43, %p44
    %p46 = scmp.ne.s32.totalorder %s35, %s38
    %p47 = scmp.eq.s32.totalorder %s16, 1
    %p48 = por %p46, %p47
    %p49 = scmp.ne.s32.totalorder %s38, %s39
    %p50 = scmp.eq.s32.totalorder %s16, 0
    %p51 = por %p49, %p50
    %p52 = scmp.ne.s32.totalorder %s38, %s39
    %p53 = scmp.eq.s32.totalorder %s17, 1
    %p54 = por %p52, %p53
    %p56 = scmp.ne.s32.totalorder %s39, %s55
    %p57 = scmp.eq.s32.totalorder %s17, 0
    %p58 = por %p56, %p57
    %s59 = ssub.s32 %s18, %s30
    %p60 = scmp.eq.s32.totalorder %s59, 0
    %s62 = sadd.s32 %s61, 1
    %s63 = scalar_select %p60, %s61, %s62
    %p66 = pneg %p60
    %p67 = scmp.eq.s32.totalorder %s11, 1
    %p68 = por %p66, %p67
    %p69 = scmp.ne.s32.totalorder %s61, %s64
    %p70 = scmp.eq.s32.totalorder %s11, 0
    %p71 = por %p69, %p70
    %p72 = scmp.ne.s32.totalorder %s61, %s64
    %p73 = scmp.eq.s32.totalorder %s16, 1
    %p74 = por %p72, %p73
    %p75 = scmp.ne.s32.totalorder %s64, %s65
    %p76 = scmp.eq.s32.totalorder %s16, 0
    %p77 = por %p75, %p76
    %p78 = scmp.ne.s32.totalorder %s64, %s65
    %p79 = scmp.eq.s32.totalorder %s17, 1
    %p80 = por %p78, %p79
    %p82 = scmp.ne.s32.totalorder %s65, %s81
    %p83 = scmp.eq.s32.totalorder %s17, 0
    %p84 = por %p82, %p83
    %s85 = ssub.s32 %s18, %s30
    %p86 = scmp.eq.s32.totalorder %s85, 0
    %s88 = sadd.s32 %s87, 1
    %s89 = scalar_select %p86, %s87, %s88
    %p92 = pneg %p86
    %p93 = scmp.eq.s32.totalorder %s11, 1
    %p94 = por %p92, %p93
    %p95 = scmp.ne.s32.totalorder %s87, %s90
    %p96 = scmp.eq.s32.totalorder %s11, 0
    %p97 = por %p95, %p96
    %p98 = scmp.ne.s32.totalorder %s87, %s90
    %p99 = scmp.eq.s32.totalorder %s16, 1
    %p100 = por %p98, %p99
    %p101 = scmp.ne.s32.totalorder %s90, %s91
    %p102 = scmp.eq.s32.totalorder %s16, 0
    %p103 = por %p101, %p102
    %p104 = scmp.ne.s32.totalorder %s90, %s91
    %p105 = scmp.eq.s32.totalorder %s17, 1
    %p106 = por %p104, %p105
    %p108 = scmp.ne.s32.totalorder %s91, %s107
    %p109 = scmp.eq.s32.totalorder %s17, 0
    %p110 = por %p108, %p109
    %s111 = ssub.s32 %s18, %s30
    %s112 = ssub.s32 %s19, %s26
    %s113 = sor.u32 %s111, %s112
    %p114 = scmp.eq.s32.totalorder %s113, 0
    %s116 = sadd.s32 %s115, 1
    %s117 = scalar_select %p114, %s115, %s116
    %p120 = pneg %p114
    %p121 = scmp.eq.s32.totalorder %s11, 1
    %p122 = por %p120, %p121
    %p123 = scmp.ne.s32.totalorder %s115, %s118
    %p124 = scmp.eq.s32.totalorder %s11, 0
    %p125 = por %p123, %p124
    %p126 = scmp.ne.s32.totalorder %s115, %s118
    %p127 = scmp.eq.s32.totalorder %s16, 1
    %p128 = por %p126, %p127
    %p129 = scmp.ne.s32.totalorder %s118, %s119
    %p130 = scmp.eq.s32.totalorder %s16, 0
    %p131 = por %p129, %p130
    %p132 = scmp.ne.s32.totalorder %s118, %s119
    %p133 = scmp.eq.s32.totalorder %s17, 1
    %p134 = por %p132, %p133
    %p136 = scmp.ne.s32.totalorder %s119, %s135
    %p137 = scmp.eq.s32.totalorder %s17, 0
    %p138 = por %p136, %p137
    %s139 = ssub.s32 %s18, %s30
    %p140 = scmp.eq.s32.totalorder %s139, 0
    %s142 = sadd.s32 %s141, 1
    %s143 = scalar_select %p140, %s141, %s142
    %p146 = pneg %p140
    %p147 = scmp.eq.s32.totalorder %s11, 1
    %p148 = por %p146, %p147
    %p149 = scmp.ne.s32.totalorder %s141, %s144
    %p150 = scmp.eq.s32.totalorder %s11, 0
    %p151 = por %p149, %p150
    %p152 = scmp.ne.s32.totalorder %s141, %s144
    %p153 = scmp.eq.s32.totalorder %s16, 1
    %p154 = por %p152, %p153
    %p155 = scmp.ne.s32.totalorder %s144, %s145
    %p156 = scmp.eq.s32.totalorder %s16, 0
    %p157 = por %p155, %p156
    %p158 = scmp.ne.s32.totalorder %s144, %s145
    %p159 = scmp.eq.s32.totalorder %s17, 1
    %p160 = por %p158, %p159
    %p162 = scmp.ne.s32.totalorder %s145, %s161
    %p163 = scmp.eq.s32.totalorder %s17, 0
    %p164 = por %p162, %p163
    %s165 = ssub.s32 %s18, %s30
    %s166 = ssub.s32 %s19, %s26
    %s167 = sor.u32 %s165, %s166
    %p168 = scmp.eq.s32.totalorder %s167, 0
    %s170 = sadd.s32 %s169, 1
    %s171 = scalar_select %p168, %s169, %s170
    %p174 = pneg %p168
    %p175 = scmp.eq.s32.totalorder %s11, 1
    %p176 = por %p174, %p175
    %p177 = scmp.ne.s32.totalorder %s169, %s172
    %p178 = scmp.eq.s32.totalorder %s11, 0
    %p179 = por %p177, %p178
    %p180 = scmp.ne.s32.totalorder %s169, %s172
    %p181 = scmp.eq.s32.totalorder %s16, 1
    %p182 = por %p180, %p181
    %p183 = scmp.ne.s32.totalorder %s172, %s173
    %p184 = scmp.eq.s32.totalorder %s16, 0
    %p185 = por %p183, %p184
    %p186 = scmp.ne.s32.totalorder %s172, %s173
    %p187 = scmp.eq.s32.totalorder %s17, 1
    %p188 = por %p186, %p187
    %p190 = scmp.ne.s32.totalorder %s173, %s189
    %p191 = scmp.eq.s32.totalorder %s17, 0
    %p192 = por %p190, %p191
    %p193 = scmp.le.s32.totalorder 1, %s11
    %p194 = scmp.lt.s32.totalorder %s11, 3
    %p195 = pnand %p193, %p194
    %p196 = pneg %p195
    // Predicated region
    $region9: #{tpu_custom_call.1} parent=5 // pred_check
      _
    $region10: #{tpu_custom_call.1} parent=5 // pred_check_branch
      %198 = sbr.rel (%p195) target = $region12
    $region11: #{tpu_custom_call.1} parent=5 // pred_region
      %s199 = ssub.s32 %s11, 1
    $region12: #{tpu_custom_call.1} parent=5 // pred_fallthru
      _
    %p200 = scmp.lt.s32.totalorder %s11, 2
    // Predicated region
    $region13: #{tpu_custom_call.1} parent=5 // pred_check
      %p201 = pneg %p200
    $region14: #{tpu_custom_call.1} parent=5 // pred_check_branch
      %203 = sbr.rel (%p201) target = $region16
    $region15: #{tpu_custom_call.1} parent=5 // pred_region
      // Predicated region
      $region17: #{tpu_custom_call.1} parent=15 // pred_check
        %p204 = pneg %p45
      $region18: #{tpu_custom_call.1} parent=15 // pred_check_branch
        %206 = sbr.rel (%p204) target = $region20
      $region19: #{tpu_custom_call.1} parent=15 // pred_region
        %s207 = smul.u32 16, %s19
        %p208 = scmp.lt.s32.totalorder %s18, 1
        %s209 = scalar_select %p208, %s18, 1
        %p210 = scmp.lt.s32.totalorder %s207, 15
        %s211 = scalar_select %p210, %s207, 15
        %s212 = smul.addr %s209, 64
        %s213 = sadd.s32 %s211, %s212
        %s214 = smul.addr %s213, 4
        %s215 = scalar_lea.vmem %s0, %s214
        %s216 = smul.u32 16, %s19
      $region20: #{tpu_custom_call.1} parent=15 // pred_fallthru
        _
      // Predicated region
      $region21: #{tpu_custom_call.1} parent=15 // pred_check
        %p217 = pneg %p71
      $region22: #{tpu_custom_call.1} parent=15 // pred_check_branch
        %219 = sbr.rel (%p217) target = $region24
      $region23: #{tpu_custom_call.1} parent=15 // pred_region
        %p220 = scmp.lt.s32.totalorder %s18, 1
        %s221 = scalar_select %p220, %s18, 1
        %s222 = smul.addr %s221, 64
        %s223 = smul.addr %s222, 4
        %s224 = scalar_lea.vmem %s1, %s223
      $region24: #{tpu_custom_call.1} parent=15 // pred_fallthru
        _
      // Predicated region
      $region25: #{tpu_custom_call.1} parent=15 // pred_check
        %p225 = pneg %p97
      $region26: #{tpu_custom_call.1} parent=15 // pred_check_branch
        %227 = sbr.rel (%p225) target = $region28
      $region27: #{tpu_custom_call.1} parent=15 // pred_region
        %p228 = scmp.lt.s32.totalorder %s18, 1
        %s229 = scalar_select %p228, %s18, 1
        %s230 = smul.addr %s229, 64
        %s231 = smul.addr %s230, 4
        %s232 = scalar_lea.vmem %s2, %s231
      $region28: #{tpu_custom_call.1} parent=15 // pred_fallthru
        _
      // Predicated region
      $region29: #{tpu_custom_call.1} parent=15 // pred_check
        %p233 = pneg %p125
      $region30: #{tpu_custom_call.1} parent=15 // pred_check_branch
        %235 = sbr.rel (%p233) target = $region32
      $region31: #{tpu_custom_call.1} parent=15 // pred_region
        %s236 = smul.u32 16, %s19
        %p237 = scmp.lt.s32.totalorder %s18, 1
        %s238 = scalar_select %p237, %s18, 1
        %p239 = scmp.lt.s32.totalorder %s236, 15
        %s240 = scalar_select %p239, %s236, 15
        %s241 = smul.addr %s238, 16
        %s242 = sadd.s32 %s240, %s241
        %s243 = smul.addr %s242, 8
        %s244 = scalar_lea.vmem %s3, %s243
        %s245 = smul.u32 16, %s19
      $region32: #{tpu_custom_call.1} parent=15 // pred_fallthru
        _
      // Predicated region
      $region33: #{tpu_custom_call.1} parent=15 // pred_check
        %p246 = pneg %p151
      $region34: #{tpu_custom_call.1} parent=15 // pred_check_branch
        %248 = sbr.rel (%p246) target = $region36
      $region35: #{tpu_custom_call.1} parent=15 // pred_region
        %p249 = scmp.lt.s32.totalorder %s18, 1
        %s250 = scalar_select %p249, %s18, 1
        %s251 = scalar_lea.vmem %s4, %s250
      $region36: #{tpu_custom_call.1} parent=15 // pred_fallthru
        _
    $region16: #{tpu_custom_call.1} parent=5 // pred_fallthru
      _
    %p252 = scmp.le.s32.totalorder 1, %s11
    %p253 = scmp.lt.s32.totalorder %s11, 3
    %p254 = pnand %p252, %p253
    %p255 = pneg %p254
    // Predicated region
    $region37: #{tpu_custom_call.1} parent=5 // pred_check
      _
    $region38: #{tpu_custom_call.1} parent=5 // pred_check_branch
      %257 = sbr.rel (%p254) target = $region40
    $region39: #{tpu_custom_call.1} parent=5 // pred_region
      %s258 = ssub.s32 %s11, 1
      %s259 = smul.u32 16, %s21
      %p260 = scmp.lt.s32.totalorder %s20, 1
      %s261 = scalar_select %p260, %s20, 1
      %p262 = scmp.lt.s32.totalorder %s259, 15
      %s263 = scalar_select %p262, %s259, 15
      %s264 = smul.addr %s261, 64
      %s265 = sadd.s32 %s263, %s264
      %s266 = smul.addr %s265, 4
      %s267 = scalar_lea.vmem %s0, %s266
      %p268 = pneg %p51
      %p269 = pneg %p48
      %p270 = scmp.lt.s32.totalorder %s20, 1
      %s271 = scalar_select %p270, %s20, 1
      %s272 = smul.addr %s271, 64
      %s273 = smul.addr %s272, 4
      %s274 = scalar_lea.vmem %s1, %s273
      %p275 = pneg %p77
      %p276 = pneg %p74
      %p277 = scmp.lt.s32.totalorder %s20, 1
      %s278 = scalar_select %p277, %s20, 1
      %s279 = smul.addr %s278, 64
      %s280 = smul.addr %s279, 4
      %s281 = scalar_lea.vmem %s2, %s280
      %p282 = pneg %p103
      %p283 = pneg %p100
      %s284 = smul.u32 16, %s21
      %p285 = scmp.lt.s32.totalorder %s20, 1
      %s286 = scalar_select %p285, %s20, 1
      %p287 = scmp.lt.s32.totalorder %s284, 15
      %s288 = scalar_select %p287, %s284, 15
      %s289 = smul.addr %s286, 16
      %s290 = sadd.s32 %s288, %s289
      %s291 = smul.addr %s290, 8
      %s292 = scalar_lea.vmem %s3, %s291
      %p293 = pneg %p131
      %p294 = pneg %p128
      %p295 = scmp.lt.s32.totalorder %s20, 1
      %s296 = scalar_select %p295, %s20, 1
      %s297 = scalar_lea.vmem %s4, %s296
      %p298 = pneg %p157
      %p299 = pneg %p154
      %p300 = pneg %p185
      %p301 = pneg %p182
      %s302 = smul.u32 16, %s21
      %p303 = scmp.lt.s32.totalorder %s20, 1
      %s304 = scalar_select %p303, %s20, 1
      %p305 = scmp.lt.s32.totalorder %s302, 15
      %s306 = scalar_select %p305, %s302, 15
      %s307 = smul.addr %s306, 2
      %s308 = smul.addr %s304, 32
      %s309 = sadd.s32 %s307, %s308
      %s310 = smul.addr %s309, 4
      %s311 = scalar_lea.vmem %s5, %s310
      %s312 = smul.u32 16, %s21
      %p313 = scmp.lt.s32.totalorder %s20, 1
      %s314 = scalar_select %p313, %s20, 1
      %p315 = scmp.lt.s32.totalorder %s312, 15
      %s316 = scalar_select %p315, %s312, 15
      %s317 = smul.addr %s314, 64
      %s318 = sadd.s32 %s316, %s317
      %s319 = smul.addr %s318, 4
      %s320 = scalar_lea.vmem %s0, %s319
      %s321 = smul.u32 16, %s21
      %p322 = scmp.lt.s32.totalorder %s20, 1
      %s323 = scalar_select %p322, %s20, 1
      %s324 = smul.addr %s323, 64
      %s325 = smul.addr %s324, 4
      %s326 = scalar_lea.vmem %s1, %s325
      %p327 = scmp.lt.s32.totalorder %s20, 1
      %s328 = scalar_select %p327, %s20, 1
      %s329 = smul.addr %s328, 64
      %s330 = smul.addr %s329, 4
      %s331 = scalar_lea.vmem %s2, %s330
      %s332 = smul.u32 16, %s21
      %p333 = scmp.lt.s32.totalorder %s20, 1
      %s334 = scalar_select %p333, %s20, 1
      %p335 = scmp.lt.s32.totalorder %s332, 15
      %s336 = scalar_select %p335, %s332, 15
      %s337 = smul.addr %s334, 16
      %s338 = sadd.s32 %s336, %s337
      %s339 = smul.addr %s338, 8
      %s340 = scalar_lea.vmem %s3, %s339
      %s341 = smul.u32 16, %s21
      %p342 = scmp.lt.s32.totalorder %s20, 1
      %s343 = scalar_select %p342, %s20, 1
      %s344 = scalar_lea.vmem %s4, %s343
      %s345 = smul.u32 16, %s21
      %p346 = scmp.lt.s32.totalorder %s20, 1
      %s347 = scalar_select %p346, %s20, 1
      %p348 = scmp.lt.s32.totalorder %s345, 15
      %s349 = scalar_select %p348, %s345, 15
      %s350 = smul.addr %s349, 2
      %s351 = smul.addr %s347, 32
      %s352 = sadd.s32 %s350, %s351
      %s353 = smul.addr %s352, 4
      %s354 = scalar_lea.vmem %s5, %s353
      %s355 = smul.u32 16, %s21
      %v356 = vld [vmem:[%s320] sm:$0xf]
      %v357 = vld [vmem:[%s320 + $0x4] sm:$0xf]
      %v358 = vld [vmem:[%s320 + $0x8] sm:$0xf]
      %v359 = vld [vmem:[%s320 + $0xc] sm:$0xf]
      %v360 = vld [vmem:[%s320 + $0x10] sm:$0xf]
      %v361 = vld [vmem:[%s320 + $0x14] sm:$0xf]
      %v362 = vld [vmem:[%s320 + $0x18] sm:$0xf]
      %v363 = vld [vmem:[%s320 + $0x1c] sm:$0xf]
      %v364 = vld [vmem:[%s320 + $0x20] sm:$0xf]
      %v365 = vld [vmem:[%s320 + $0x24] sm:$0xf]
      %v366 = vld [vmem:[%s320 + $0x28] sm:$0xf]
      %v367 = vld [vmem:[%s320 + $0x2c] sm:$0xf]
      %v368 = vld [vmem:[%s320 + $0x30] sm:$0xf]
      %v369 = vld [vmem:[%s320 + $0x34] sm:$0xf]
      %v370 = vld [vmem:[%s320 + $0x38] sm:$0xf]
      %v371 = vld [vmem:[%s320 + $0x3c] sm:$0xf]
      %v372 = vld [vmem:[%s320 + $0x40] sm:$0xf]
      %v373 = vld [vmem:[%s320 + $0x44] sm:$0xf]
      %v374 = vld [vmem:[%s320 + $0x48] sm:$0xf]
      %v375 = vld [vmem:[%s320 + $0x4c] sm:$0xf]
      %v376 = vld [vmem:[%s320 + $0x50] sm:$0xf]
      %v377 = vld [vmem:[%s320 + $0x54] sm:$0xf]
      %v378 = vld [vmem:[%s320 + $0x58] sm:$0xf]
      %v379 = vld [vmem:[%s320 + $0x5c] sm:$0xf]
      %v380 = vld [vmem:[%s320 + $0x60] sm:$0xf]
      %v381 = vld [vmem:[%s320 + $0x64] sm:$0xf]
      %v382 = vld [vmem:[%s320 + $0x68] sm:$0xf]
      %v383 = vld [vmem:[%s320 + $0x6c] sm:$0xf]
      %v384 = vld [vmem:[%s320 + $0x70] sm:$0xf]
      %v385 = vld [vmem:[%s320 + $0x74] sm:$0xf]
      %v386 = vld [vmem:[%s320 + $0x78] sm:$0xf]
      %v387 = vld [vmem:[%s320 + $0x7c] sm:$0xf]
      %v388 = vld [vmem:[%s320 + $0x80] sm:$0xf]
      %v389 = vld [vmem:[%s320 + $0x84] sm:$0xf]
      %v390 = vld [vmem:[%s320 + $0x88] sm:$0xf]
      %v391 = vld [vmem:[%s320 + $0x8c] sm:$0xf]
      %v392 = vld [vmem:[%s320 + $0x90] sm:$0xf]
      %v393 = vld [vmem:[%s320 + $0x94] sm:$0xf]
      %v394 = vld [vmem:[%s320 + $0x98] sm:$0xf]
      %v395 = vld [vmem:[%s320 + $0x9c] sm:$0xf]
      %v396 = vld [vmem:[%s320 + $0xa0] sm:$0xf]
      %v397 = vld [vmem:[%s320 + $0xa4] sm:$0xf]
      %v398 = vld [vmem:[%s320 + $0xa8] sm:$0xf]
      %v399 = vld [vmem:[%s320 + $0xac] sm:$0xf]
      %v400 = vld [vmem:[%s320 + $0xb0] sm:$0xf]
      %v401 = vld [vmem:[%s320 + $0xb4] sm:$0xf]
      %v402 = vld [vmem:[%s320 + $0xb8] sm:$0xf]
      %v403 = vld [vmem:[%s320 + $0xbc] sm:$0xf]
      %v404 = vld [vmem:[%s320 + $0xc0] sm:$0xf]
      %v405 = vld [vmem:[%s320 + $0xc4] sm:$0xf]
      %v406 = vld [vmem:[%s320 + $0xc8] sm:$0xf]
      %v407 = vld [vmem:[%s320 + $0xcc] sm:$0xf]
      %v408 = vld [vmem:[%s320 + $0xd0] sm:$0xf]
      %v409 = vld [vmem:[%s320 + $0xd4] sm:$0xf]
      %v410 = vld [vmem:[%s320 + $0xd8] sm:$0xf]
      %v411 = vld [vmem:[%s320 + $0xdc] sm:$0xf]
      %v412 = vld [vmem:[%s320 + $0xe0] sm:$0xf]
      %v413 = vld [vmem:[%s320 + $0xe4] sm:$0xf]
      %v414 = vld [vmem:[%s320 + $0xe8] sm:$0xf]
      %v415 = vld [vmem:[%s320 + $0xec] sm:$0xf]
      %v416 = vld [vmem:[%s320 + $0xf0] sm:$0xf]
      %v417 = vld [vmem:[%s320 + $0xf4] sm:$0xf]
      %v418 = vld [vmem:[%s320 + $0xf8] sm:$0xf]
      %v419 = vld [vmem:[%s320 + $0xfc] sm:$0xf]
      %v420 = vld [vmem:[%s326] sm:$0xf]
      %v421 = vld [vmem:[%s326 + $0x4] sm:$0xf]
      %v422 = vld [vmem:[%s326 + $0x8] sm:$0xf]
      %v423 = vld [vmem:[%s326 + $0xc] sm:$0xf]
      %v424 = vld [vmem:[%s326 + $0x10] sm:$0xf]
      %v425 = vld [vmem:[%s326 + $0x14] sm:$0xf]
      %v426 = vld [vmem:[%s326 + $0x18] sm:$0xf]
      %v427 = vld [vmem:[%s326 + $0x1c] sm:$0xf]
      %v428 = vld [vmem:[%s326 + $0x20] sm:$0xf]
      %v429 = vld [vmem:[%s326 + $0x24] sm:$0xf]
      %v430 = vld [vmem:[%s326 + $0x28] sm:$0xf]
      %v431 = vld [vmem:[%s326 + $0x2c] sm:$0xf]
      %v432 = vld [vmem:[%s326 + $0x30] sm:$0xf]
      %v433 = vld [vmem:[%s326 + $0x34] sm:$0xf]
      %v434 = vld [vmem:[%s326 + $0x38] sm:$0xf]
      %v435 = vld [vmem:[%s326 + $0x3c] sm:$0xf]
      %v436 = vld [vmem:[%s326 + $0x40] sm:$0xf]
      %v437 = vld [vmem:[%s326 + $0x44] sm:$0xf]
      %v438 = vld [vmem:[%s326 + $0x48] sm:$0xf]
      %v439 = vld [vmem:[%s326 + $0x4c] sm:$0xf]
      %v440 = vld [vmem:[%s326 + $0x50] sm:$0xf]
      %v441 = vld [vmem:[%s326 + $0x54] sm:$0xf]
      %v442 = vld [vmem:[%s326 + $0x58] sm:$0xf]
      %v443 = vld [vmem:[%s326 + $0x5c] sm:$0xf]
      %v444 = vld [vmem:[%s326 + $0x60] sm:$0xf]
      %v445 = vld [vmem:[%s326 + $0x64] sm:$0xf]
      %v446 = vld [vmem:[%s326 + $0x68] sm:$0xf]
      %v447 = vld [vmem:[%s326 + $0x6c] sm:$0xf]
      %v448 = vld [vmem:[%s326 + $0x70] sm:$0xf]
      %v449 = vld [vmem:[%s326 + $0x74] sm:$0xf]
      %v450 = vld [vmem:[%s326 + $0x78] sm:$0xf]
      %v451 = vld [vmem:[%s326 + $0x7c] sm:$0xf]
      %v452 = vld [vmem:[%s326 + $0x80] sm:$0xf]
      %v453 = vld [vmem:[%s326 + $0x84] sm:$0xf]
      %v454 = vld [vmem:[%s326 + $0x88] sm:$0xf]
      %v455 = vld [vmem:[%s326 + $0x8c] sm:$0xf]
      %v456 = vld [vmem:[%s326 + $0x90] sm:$0xf]
      %v457 = vld [vmem:[%s326 + $0x94] sm:$0xf]
      %v458 = vld [vmem:[%s326 + $0x98] sm:$0xf]
      %v459 = vld [vmem:[%s326 + $0x9c] sm:$0xf]
      %v460 = vld [vmem:[%s326 + $0xa0] sm:$0xf]
      %v461 = vld [vmem:[%s326 + $0xa4] sm:$0xf]
      %v462 = vld [vmem:[%s326 + $0xa8] sm:$0xf]
      %v463 = vld [vmem:[%s326 + $0xac] sm:$0xf]
      %v464 = vld [vmem:[%s326 + $0xb0] sm:$0xf]
      %v465 = vld [vmem:[%s326 + $0xb4] sm:$0xf]
      %v466 = vld [vmem:[%s326 + $0xb8] sm:$0xf]
      %v467 = vld [vmem:[%s326 + $0xbc] sm:$0xf]
      %v468 = vld [vmem:[%s326 + $0xc0] sm:$0xf]
      %v469 = vld [vmem:[%s326 + $0xc4] sm:$0xf]
      %v470 = vld [vmem:[%s326 + $0xc8] sm:$0xf]
      %v471 = vld [vmem:[%s326 + $0xcc] sm:$0xf]
      %v472 = vld [vmem:[%s326 + $0xd0] sm:$0xf]
      %v473 = vld [vmem:[%s326 + $0xd4] sm:$0xf]
      %v474 = vld [vmem:[%s326 + $0xd8] sm:$0xf]
      %v475 = vld [vmem:[%s326 + $0xdc] sm:$0xf]
      %v476 = vld [vmem:[%s326 + $0xe0] sm:$0xf]
      %v477 = vld [vmem:[%s326 + $0xe4] sm:$0xf]
      %v478 = vld [vmem:[%s326 + $0xe8] sm:$0xf]
      %v479 = vld [vmem:[%s326 + $0xec] sm:$0xf]
      %v480 = vld [vmem:[%s326 + $0xf0] sm:$0xf]
      %v481 = vld [vmem:[%s326 + $0xf4] sm:$0xf]
      %v482 = vld [vmem:[%s326 + $0xf8] sm:$0xf]
      %v483 = vld [vmem:[%s326 + $0xfc] sm:$0xf]
      %v484 = vld [vmem:[%s340] sm:$0xff]
      %v485 = vld [vmem:[%s340 + $0x8] sm:$0xff]
      %v486 = vld [vmem:[%s340 + $0x10] sm:$0xff]
      %v487 = vld [vmem:[%s340 + $0x18] sm:$0xff]
      %v488 = vld [vmem:[%s340 + $0x20] sm:$0xff]
      %v489 = vld [vmem:[%s340 + $0x28] sm:$0xff]
      %v490 = vld [vmem:[%s340 + $0x30] sm:$0xff]
      %v491 = vld [vmem:[%s340 + $0x38] sm:$0xff]
      %v492 = vld [vmem:[%s340 + $0x40] sm:$0xff]
      %v493 = vld [vmem:[%s340 + $0x48] sm:$0xff]
      %v494 = vld [vmem:[%s340 + $0x50] sm:$0xff]
      %v495 = vld [vmem:[%s340 + $0x58] sm:$0xff]
      %v496 = vld [vmem:[%s340 + $0x60] sm:$0xff]
      %v497 = vld [vmem:[%s340 + $0x68] sm:$0xff]
      %v498 = vld [vmem:[%s340 + $0x70] sm:$0xff]
      %v499 = vld [vmem:[%s340 + $0x78] sm:$0xff]
      %v500 = vld [vmem:[%s344] sm:$0x1]
      %502 = vset.pattern.permute.xlu0 0
      %503 = vperm.xlu0 %502, %v484
      %v504 = vpop.permute.xlu0 %503
      %507 = vset.pattern.permute.xlu0 0
      %508 = vperm.xlu0 %507, %v485
      %v509 = vpop.permute.xlu0 %508
      %512 = vset.pattern.permute.xlu0 0
      %513 = vperm.xlu0 %512, %v486
      %v514 = vpop.permute.xlu0 %513
      %517 = vset.pattern.permute.xlu0 0
      %518 = vperm.xlu0 %517, %v487
      %v519 = vpop.permute.xlu0 %518
      %522 = vset.pattern.permute.xlu0 0
      %523 = vperm.xlu0 %522, %v488
      %v524 = vpop.permute.xlu0 %523
      %527 = vset.pattern.permute.xlu0 0
      %528 = vperm.xlu0 %527, %v489
      %v529 = vpop.permute.xlu0 %528
      %532 = vset.pattern.permute.xlu0 0
      %533 = vperm.xlu0 %532, %v490
      %v534 = vpop.permute.xlu0 %533
      %537 = vset.pattern.permute.xlu0 0
      %538 = vperm.xlu0 %537, %v491
      %v539 = vpop.permute.xlu0 %538
      %542 = vset.pattern.permute.xlu0 0
      %543 = vperm.xlu0 %542, %v492
      %v544 = vpop.permute.xlu0 %543
      %547 = vset.pattern.permute.xlu0 0
      %548 = vperm.xlu0 %547, %v493
      %v549 = vpop.permute.xlu0 %548
      %552 = vset.pattern.permute.xlu0 0
      %553 = vperm.xlu0 %552, %v494
      %v554 = vpop.permute.xlu0 %553
      %557 = vset.pattern.permute.xlu0 0
      %558 = vperm.xlu0 %557, %v495
      %v559 = vpop.permute.xlu0 %558
      %562 = vset.pattern.permute.xlu0 0
      %563 = vperm.xlu0 %562, %v496
      %v564 = vpop.permute.xlu0 %563
      %567 = vset.pattern.permute.xlu0 0
      %568 = vperm.xlu0 %567, %v497
      %v569 = vpop.permute.xlu0 %568
      %572 = vset.pattern.permute.xlu0 0
      %573 = vperm.xlu0 %572, %v498
      %v574 = vpop.permute.xlu0 %573
      %577 = vset.pattern.permute.xlu0 0
      %578 = vperm.xlu0 %577, %v499
      %v579 = vpop.permute.xlu0 %578
      %v582 = vperm.slane %v500, 0
      %v584 = vmul.f32 %v504, %v582
      %v585 = vmul.f32 %v509, %v582
      %v586 = vmul.f32 %v514, %v582
      %v587 = vmul.f32 %v519, %v582
      %v588 = vmul.f32 %v524, %v582
      %v589 = vmul.f32 %v529, %v582
      %v590 = vmul.f32 %v534, %v582
      %v591 = vmul.f32 %v539, %v582
      %v592 = vmul.f32 %v544, %v582
      %v593 = vmul.f32 %v549, %v582
      %v594 = vmul.f32 %v554, %v582
      %v595 = vmul.f32 %v559, %v582
      %v596 = vmul.f32 %v564, %v582
      %v597 = vmul.f32 %v569, %v582
      %v598 = vmul.f32 %v574, %v582
      %v599 = vmul.f32 %v579, %v582
      %v600 = vsub.f32 %v584, 1.0
      %v601 = vsub.f32 %v585, 1.0
      %v602 = vsub.f32 %v586, 1.0
      %v603 = vsub.f32 %v587, 1.0
      %v604 = vsub.f32 %v588, 1.0
      %v605 = vsub.f32 %v589, 1.0
      %v606 = vsub.f32 %v590, 1.0
      %v607 = vsub.f32 %v591, 1.0
      %v608 = vsub.f32 %v592, 1.0
      %v609 = vsub.f32 %v593, 1.0
      %v610 = vsub.f32 %v594, 1.0
      %v611 = vsub.f32 %v595, 1.0
      %v612 = vsub.f32 %v596, 1.0
      %v613 = vsub.f32 %v597, 1.0
      %v614 = vsub.f32 %v598, 1.0
      %v615 = vsub.f32 %v599, 1.0
      %v616 = vmul.f32 %v600, 100000.0
      %v617 = vmul.f32 %v601, 100000.0
      %v618 = vmul.f32 %v602, 100000.0
      %v619 = vmul.f32 %v603, 100000.0
      %v620 = vmul.f32 %v604, 100000.0
      %v621 = vmul.f32 %v605, 100000.0
      %v622 = vmul.f32 %v606, 100000.0
      %v623 = vmul.f32 %v607, 100000.0
      %v624 = vmul.f32 %v608, 100000.0
      %v625 = vmul.f32 %v609, 100000.0
      %v626 = vmul.f32 %v610, 100000.0
      %v627 = vmul.f32 %v611, 100000.0
      %v628 = vmul.f32 %v612, 100000.0
      %v629 = vmul.f32 %v613, 100000.0
      %v630 = vmul.f32 %v614, 100000.0
      %v631 = vmul.f32 %v615, 100000.0
      %v632 = vlaneseq
      %v633 = vand.u32 %v632, 127
      %vm634 = vcmp.lt.s32.totalorder %v633, 8
      %v635 = vsel %vm634, 0.0, -200000.0
      %v636 = vadd.f32 %v616, %v635
      %v637 = vadd.f32 %v617, %v635
      %v638 = vadd.f32 %v618, %v635
      %v639 = vadd.f32 %v619, %v635
      %v640 = vadd.f32 %v620, %v635
      %v641 = vadd.f32 %v621, %v635
      %v642 = vadd.f32 %v622, %v635
      %v643 = vadd.f32 %v623, %v635
      %v644 = vadd.f32 %v624, %v635
      %v645 = vadd.f32 %v625, %v635
      %v646 = vadd.f32 %v626, %v635
      %v647 = vadd.f32 %v627, %v635
      %v648 = vadd.f32 %v628, %v635
      %v649 = vadd.f32 %v629, %v635
      %v650 = vadd.f32 %v630, %v635
      %v651 = vadd.f32 %v631, %v635
      %v668 = vunpack.c.l.b16 %v356
      %v669 = vunpack.c.l.b16 %v357
      %v670 = vunpack.c.l.b16 %v358
      %v671 = vunpack.c.l.b16 %v359
      %v672 = vunpack.c.l.b16 %v360
      %v673 = vunpack.c.l.b16 %v361
      %v674 = vunpack.c.l.b16 %v362
      %v675 = vunpack.c.l.b16 %v363
      %v676 = vunpack.c.l.b16 %v364
      %v677 = vunpack.c.l.b16 %v365
      %v678 = vunpack.c.l.b16 %v366
      %v679 = vunpack.c.l.b16 %v367
      %v680 = vunpack.c.l.b16 %v368
      %v681 = vunpack.c.l.b16 %v369
      %v682 = vunpack.c.l.b16 %v370
      %v683 = vunpack.c.l.b16 %v371
      %v684 = vpack.c.b16 %v669, %v668
      %v685 = vpack.c.b16 %v671, %v670
      %v686 = vpack.c.b16 %v673, %v672
      %v687 = vpack.c.b16 %v675, %v674
      %v688 = vpack.c.b16 %v677, %v676
      %v689 = vpack.c.b16 %v679, %v678
      %v690 = vpack.c.b16 %v681, %v680
      %v691 = vpack.c.b16 %v683, %v682
      %v708 = vunpack.c.l.b16 %v420
      %v709 = vunpack.c.l.b16 %v421
      %v710 = vunpack.c.l.b16 %v422
      %v711 = vunpack.c.l.b16 %v423
      %v712 = vunpack.c.l.b16 %v424
      %v713 = vunpack.c.l.b16 %v425
      %v714 = vunpack.c.l.b16 %v426
      %v715 = vunpack.c.l.b16 %v427
      %v716 = vunpack.c.l.b16 %v428
      %v717 = vunpack.c.l.b16 %v429
      %v718 = vunpack.c.l.b16 %v430
      %v719 = vunpack.c.l.b16 %v431
      %v720 = vunpack.c.l.b16 %v432
      %v721 = vunpack.c.l.b16 %v433
      %v722 = vunpack.c.l.b16 %v434
      %v723 = vunpack.c.l.b16 %v435
      %v724 = vpack.c.b16 %v709, %v708
      %v725 = vpack.c.b16 %v711, %v710
      %v726 = vpack.c.b16 %v713, %v712
      %v727 = vpack.c.b16 %v715, %v714
      %v728 = vpack.c.b16 %v717, %v716
      %v729 = vpack.c.b16 %v719, %v718
      %v730 = vpack.c.b16 %v721, %v720
      %v731 = vpack.c.b16 %v723, %v722
      %vm732 = vcmask 130048
      %v734 = vsel %vm732, %v684, 0
      %v737 = vsel %vm732, %v685, 0
      %v740 = vsel %vm732, %v686, 0
      %v743 = vsel %vm732, %v687, 0
      %v746 = vsel %vm732, %v688, 0
      %v749 = vsel %vm732, %v689, 0
      %v752 = vsel %vm732, %v690, 0
      %v755 = vsel %vm732, %v691, 0
      %v758 = vsel %vm732, %v724, 0
      %v761 = vsel %vm732, %v725, 0
      %v764 = vsel %vm732, %v726, 0
      %v767 = vsel %vm732, %v727, 0
      %v770 = vsel %vm732, %v728, 0
      %v773 = vsel %vm732, %v729, 0
      %v776 = vsel %vm732, %v730, 0
      %v779 = vsel %vm732, %v731, 0
      %781 = vmatpush.bf16.xpose.msra.mxu0 %v779
      %782 = vmatpush.bf16.xpose.msra.mxu0 %v776
      %783 = vmatpush.bf16.xpose.msra.mxu0 %v773
      %784 = vmatpush.bf16.xpose.msra.mxu0 %v770
      %785 = vmatpush.bf16.xpose.msra.mxu0 %v767
      %786 = vmatpush.bf16.xpose.msra.mxu0 %v764
      %787 = vmatpush.bf16.xpose.msra.mxu0 %v761
      %788 = vmatpush.bf16.xpose.msra.mxu0 %v758
      %789 = vmatmul.bf16.gmra.mxu0 %v734
      %v790 = vpop.f32.mrf.mxu0
      %v791 = vadd.f32 %v636, %v790
      %v792 = vpop.f32.mrf.mxu0
      %v793 = vadd.f32 %v637, %v792
      %794 = vmatmul.bf16.gmra.mxu0 %v737
      %v795 = vpop.f32.mrf.mxu0
      %v796 = vadd.f32 %v638, %v795
      %v797 = vpop.f32.mrf.mxu0
      %v798 = vadd.f32 %v639, %v797
      %799 = vmatmul.bf16.gmra.mxu0 %v740
      %v800 = vpop.f32.mrf.mxu0
      %v801 = vadd.f32 %v640, %v800
      %v802 = vpop.f32.mrf.mxu0
      %v803 = vadd.f32 %v641, %v802
      %804 = vmatmul.bf16.gmra.mxu0 %v743
      %v805 = vpop.f32.mrf.mxu0
      %v806 = vadd.f32 %v642, %v805
      %v807 = vpop.f32.mrf.mxu0
      %v808 = vadd.f32 %v643, %v807
      %809 = vmatmul.bf16.gmra.mxu0 %v746
      %v810 = vpop.f32.mrf.mxu0
      %v811 = vadd.f32 %v644, %v810
      %v812 = vpop.f32.mrf.mxu0
      %v813 = vadd.f32 %v645, %v812
      %814 = vmatmul.bf16.gmra.mxu0 %v749
      %v815 = vpop.f32.mrf.mxu0
      %v816 = vadd.f32 %v646, %v815
      %v817 = vpop.f32.mrf.mxu0
      %v818 = vadd.f32 %v647, %v817
      %819 = vmatmul.bf16.gmra.mxu0 %v752
      %v820 = vpop.f32.mrf.mxu0
      %v821 = vadd.f32 %v648, %v820
      %v822 = vpop.f32.mrf.mxu0
      %v823 = vadd.f32 %v649, %v822
      %824 = vmatmul.bf16.gmra.mxu0 %v755
      %v825 = vpop.f32.mrf.mxu0
      %v826 = vadd.f32 %v650, %v825
      %v827 = vpop.f32.mrf.mxu0
      %v828 = vadd.f32 %v651, %v827
      %829 = vdwg.mxu0
      %v846 = vunpack.c.l.b16 %v372
      %v847 = vunpack.c.l.b16 %v373
      %v848 = vunpack.c.l.b16 %v374
      %v849 = vunpack.c.l.b16 %v375
      %v850 = vunpack.c.l.b16 %v376
      %v851 = vunpack.c.l.b16 %v377
      %v852 = vunpack.c.l.b16 %v378
      %v853 = vunpack.c.l.b16 %v379
      %v854 = vunpack.c.l.b16 %v380
      %v855 = vunpack.c.l.b16 %v381
      %v856 = vunpack.c.l.b16 %v382
      %v857 = vunpack.c.l.b16 %v383
      %v858 = vunpack.c.l.b16 %v384
      %v859 = vunpack.c.l.b16 %v385
      %v860 = vunpack.c.l.b16 %v386
      %v861 = vunpack.c.l.b16 %v387
      %v862 = vpack.c.b16 %v847, %v846
      %v863 = vpack.c.b16 %v849, %v848
      %v864 = vpack.c.b16 %v851, %v850
      %v865 = vpack.c.b16 %v853, %v852
      %v866 = vpack.c.b16 %v855, %v854
      %v867 = vpack.c.b16 %v857, %v856
      %v868 = vpack.c.b16 %v859, %v858
      %v869 = vpack.c.b16 %v861, %v860
      %v886 = vunpack.c.l.b16 %v436
      %v887 = vunpack.c.l.b16 %v437
      %v888 = vunpack.c.l.b16 %v438
      %v889 = vunpack.c.l.b16 %v439
      %v890 = vunpack.c.l.b16 %v440
      %v891 = vunpack.c.l.b16 %v441
      %v892 = vunpack.c.l.b16 %v442
      %v893 = vunpack.c.l.b16 %v443
      %v894 = vunpack.c.l.b16 %v444
      %v895 = vunpack.c.l.b16 %v445
      %v896 = vunpack.c.l.b16 %v446
      %v897 = vunpack.c.l.b16 %v447
      %v898 = vunpack.c.l.b16 %v448
      %v899 = vunpack.c.l.b16 %v449
      %v900 = vunpack.c.l.b16 %v450
      %v901 = vunpack.c.l.b16 %v451
      %v902 = vpack.c.b16 %v887, %v886
      %v903 = vpack.c.b16 %v889, %v888
      %v904 = vpack.c.b16 %v891, %v890
      %v905 = vpack.c.b16 %v893, %v892
      %v906 = vpack.c.b16 %v895, %v894
      %v907 = vpack.c.b16 %v897, %v896
      %v908 = vpack.c.b16 %v899, %v898
      %v909 = vpack.c.b16 %v901, %v900
      %v911 = vsel %vm732, %v862, 0
      %v914 = vsel %vm732, %v863, 0
      %v917 = vsel %vm732, %v864, 0
      %v920 = vsel %vm732, %v865, 0
      %v923 = vsel %vm732, %v866, 0
      %v926 = vsel %vm732, %v867, 0
      %v929 = vsel %vm732, %v868, 0
      %v932 = vsel %vm732, %v869, 0
      %v935 = vsel %vm732, %v902, 0
      %v938 = vsel %vm732, %v903, 0
      %v941 = vsel %vm732, %v904, 0
      %v944 = vsel %vm732, %v905, 0
      %v947 = vsel %vm732, %v906, 0
      %v950 = vsel %vm732, %v907, 0
      %v953 = vsel %vm732, %v908, 0
      %v956 = vsel %vm732, %v909, 0
      %958 = vmatpush.bf16.xpose.msra.mxu0 %v956
      %959 = vmatpush.bf16.xpose.msra.mxu0 %v953
      %960 = vmatpush.bf16.xpose.msra.mxu0 %v950
      %961 = vmatpush.bf16.xpose.msra.mxu0 %v947
      %962 = vmatpush.bf16.xpose.msra.mxu0 %v944
      %963 = vmatpush.bf16.xpose.msra.mxu0 %v941
      %964 = vmatpush.bf16.xpose.msra.mxu0 %v938
      %965 = vmatpush.bf16.xpose.msra.mxu0 %v935
      %966 = vmatmul.bf16.gmra.mxu0 %v911
      %v967 = vpop.f32.mrf.mxu0
      %v968 = vadd.f32 %v636, %v967
      %v969 = vpop.f32.mrf.mxu0
      %v970 = vadd.f32 %v637, %v969
      %971 = vmatmul.bf16.gmra.mxu0 %v914
      %v972 = vpop.f32.mrf.mxu0
      %v973 = vadd.f32 %v638, %v972
      %v974 = vpop.f32.mrf.mxu0
      %v975 = vadd.f32 %v639, %v974
      %976 = vmatmul.bf16.gmra.mxu0 %v917
      %v977 = vpop.f32.mrf.mxu0
      %v978 = vadd.f32 %v640, %v977
      %v979 = vpop.f32.mrf.mxu0
      %v980 = vadd.f32 %v641, %v979
      %981 = vmatmul.bf16.gmra.mxu0 %v920
      %v982 = vpop.f32.mrf.mxu0
      %v983 = vadd.f32 %v642, %v982
      %v984 = vpop.f32.mrf.mxu0
      %v985 = vadd.f32 %v643, %v984
      %986 = vmatmul.bf16.gmra.mxu0 %v923
      %v987 = vpop.f32.mrf.mxu0
      %v988 = vadd.f32 %v644, %v987
      %v989 = vpop.f32.mrf.mxu0
      %v990 = vadd.f32 %v645, %v989
      %991 = vmatmul.bf16.gmra.mxu0 %v926
      %v992 = vpop.f32.mrf.mxu0
      %v993 = vadd.f32 %v646, %v992
      %v994 = vpop.f32.mrf.mxu0
      %v995 = vadd.f32 %v647, %v994
      %996 = vmatmul.bf16.gmra.mxu0 %v929
      %v997 = vpop.f32.mrf.mxu0
      %v998 = vadd.f32 %v648, %v997
      %v999 = vpop.f32.mrf.mxu0
      %v1000 = vadd.f32 %v649, %v999
      %1001 = vmatmul.bf16.gmra.mxu0 %v932
      %v1002 = vpop.f32.mrf.mxu0
      %v1003 = vadd.f32 %v650, %v1002
      %v1004 = vpop.f32.mrf.mxu0
      %v1005 = vadd.f32 %v651, %v1004
      %1006 = vdwg.mxu0
      %v1023 = vunpack.c.l.b16 %v388
      %v1024 = vunpack.c.l.b16 %v389
      %v1025 = vunpack.c.l.b16 %v390
      %v1026 = vunpack.c.l.b16 %v391
      %v1027 = vunpack.c.l.b16 %v392
      %v1028 = vunpack.c.l.b16 %v393
      %v1029 = vunpack.c.l.b16 %v394
      %v1030 = vunpack.c.l.b16 %v395
      %v1031 = vunpack.c.l.b16 %v396
      %v1032 = vunpack.c.l.b16 %v397
      %v1033 = vunpack.c.l.b16 %v398
      %v1034 = vunpack.c.l.b16 %v399
      %v1035 = vunpack.c.l.b16 %v400
      %v1036 = vunpack.c.l.b16 %v401
      %v1037 = vunpack.c.l.b16 %v402
      %v1038 = vunpack.c.l.b16 %v403
      %v1039 = vpack.c.b16 %v1024, %v1023
      %v1040 = vpack.c.b16 %v1026, %v1025
      %v1041 = vpack.c.b16 %v1028, %v1027
      %v1042 = vpack.c.b16 %v1030, %v1029
      %v1043 = vpack.c.b16 %v1032, %v1031
      %v1044 = vpack.c.b16 %v1034, %v1033
      %v1045 = vpack.c.b16 %v1036, %v1035
      %v1046 = vpack.c.b16 %v1038, %v1037
      %v1063 = vunpack.c.l.b16 %v452
      %v1064 = vunpack.c.l.b16 %v453
      %v1065 = vunpack.c.l.b16 %v454
      %v1066 = vunpack.c.l.b16 %v455
      %v1067 = vunpack.c.l.b16 %v456
      %v1068 = vunpack.c.l.b16 %v457
      %v1069 = vunpack.c.l.b16 %v458
      %v1070 = vunpack.c.l.b16 %v459
      %v1071 = vunpack.c.l.b16 %v460
      %v1072 = vunpack.c.l.b16 %v461
      %v1073 = vunpack.c.l.b16 %v462
      %v1074 = vunpack.c.l.b16 %v463
      %v1075 = vunpack.c.l.b16 %v464
      %v1076 = vunpack.c.l.b16 %v465
      %v1077 = vunpack.c.l.b16 %v466
      %v1078 = vunpack.c.l.b16 %v467
      %v1079 = vpack.c.b16 %v1064, %v1063
      %v1080 = vpack.c.b16 %v1066, %v1065
      %v1081 = vpack.c.b16 %v1068, %v1067
      %v1082 = vpack.c.b16 %v1070, %v1069
      %v1083 = vpack.c.b16 %v1072, %v1071
      %v1084 = vpack.c.b16 %v1074, %v1073
      %v1085 = vpack.c.b16 %v1076, %v1075
      %v1086 = vpack.c.b16 %v1078, %v1077
      %v1088 = vsel %vm732, %v1039, 0
      %v1091 = vsel %vm732, %v1040, 0
      %v1094 = vsel %vm732, %v1041, 0
      %v1097 = vsel %vm732, %v1042, 0
      %v1100 = vsel %vm732, %v1043, 0
      %v1103 = vsel %vm732, %v1044, 0
      %v1106 = vsel %vm732, %v1045, 0
      %v1109 = vsel %vm732, %v1046, 0
      %v1112 = vsel %vm732, %v1079, 0
      %v1115 = vsel %vm732, %v1080, 0
      %v1118 = vsel %vm732, %v1081, 0
      %v1121 = vsel %vm732, %v1082, 0
      %v1124 = vsel %vm732, %v1083, 0
      %v1127 = vsel %vm732, %v1084, 0
      %v1130 = vsel %vm732, %v1085, 0
      %v1133 = vsel %vm732, %v1086, 0
      %1135 = vmatpush.bf16.xpose.msra.mxu0 %v1133
      %1136 = vmatpush.bf16.xpose.msra.mxu0 %v1130
      %1137 = vmatpush.bf16.xpose.msra.mxu0 %v1127
      %1138 = vmatpush.bf16.xpose.msra.mxu0 %v1124
      %1139 = vmatpush.bf16.xpose.msra.mxu0 %v1121
      %1140 = vmatpush.bf16.xpose.msra.mxu0 %v1118
      %1141 = vmatpush.bf16.xpose.msra.mxu0 %v1115
      %1142 = vmatpush.bf16.xpose.msra.mxu0 %v1112
      %1143 = vmatmul.bf16.gmra.mxu0 %v1088
      %v1144 = vpop.f32.mrf.mxu0
      %v1145 = vadd.f32 %v636, %v1144
      %v1146 = vpop.f32.mrf.mxu0
      %v1147 = vadd.f32 %v637, %v1146
      %1148 = vmatmul.bf16.gmra.mxu0 %v1091
      %v1149 = vpop.f32.mrf.mxu0
      %v1150 = vadd.f32 %v638, %v1149
      %v1151 = vpop.f32.mrf.mxu0
      %v1152 = vadd.f32 %v639, %v1151
      %1153 = vmatmul.bf16.gmra.mxu0 %v1094
      %v1154 = vpop.f32.mrf.mxu0
      %v1155 = vadd.f32 %v640, %v1154
      %v1156 = vpop.f32.mrf.mxu0
      %v1157 = vadd.f32 %v641, %v1156
      %1158 = vmatmul.bf16.gmra.mxu0 %v1097
      %v1159 = vpop.f32.mrf.mxu0
      %v1160 = vadd.f32 %v642, %v1159
      %v1161 = vpop.f32.mrf.mxu0
      %v1162 = vadd.f32 %v643, %v1161
      %1163 = vmatmul.bf16.gmra.mxu0 %v1100
      %v1164 = vpop.f32.mrf.mxu0
      %v1165 = vadd.f32 %v644, %v1164
      %v1166 = vpop.f32.mrf.mxu0
      %v1167 = vadd.f32 %v645, %v1166
      %1168 = vmatmul.bf16.gmra.mxu0 %v1103
      %v1169 = vpop.f32.mrf.mxu0
      %v1170 = vadd.f32 %v646, %v1169
      %v1171 = vpop.f32.mrf.mxu0
      %v1172 = vadd.f32 %v647, %v1171
      %1173 = vmatmul.bf16.gmra.mxu0 %v1106
      %v1174 = vpop.f32.mrf.mxu0
      %v1175 = vadd.f32 %v648, %v1174
      %v1176 = vpop.f32.mrf.mxu0
      %v1177 = vadd.f32 %v649, %v1176
      %1178 = vmatmul.bf16.gmra.mxu0 %v1109
      %v1179 = vpop.f32.mrf.mxu0
      %v1180 = vadd.f32 %v650, %v1179
      %v1181 = vpop.f32.mrf.mxu0
      %v1182 = vadd.f32 %v651, %v1181
      %1183 = vdwg.mxu0
      %v1200 = vunpack.c.l.b16 %v404
      %v1201 = vunpack.c.l.b16 %v405
      %v1202 = vunpack.c.l.b16 %v406
      %v1203 = vunpack.c.l.b16 %v407
      %v1204 = vunpack.c.l.b16 %v408
      %v1205 = vunpack.c.l.b16 %v409
      %v1206 = vunpack.c.l.b16 %v410
      %v1207 = vunpack.c.l.b16 %v411
      %v1208 = vunpack.c.l.b16 %v412
      %v1209 = vunpack.c.l.b16 %v413
      %v1210 = vunpack.c.l.b16 %v414
      %v1211 = vunpack.c.l.b16 %v415
      %v1212 = vunpack.c.l.b16 %v416
      %v1213 = vunpack.c.l.b16 %v417
      %v1214 = vunpack.c.l.b16 %v418
      %v1215 = vunpack.c.l.b16 %v419
      %v1216 = vpack.c.b16 %v1201, %v1200
      %v1217 = vpack.c.b16 %v1203, %v1202
      %v1218 = vpack.c.b16 %v1205, %v1204
      %v1219 = vpack.c.b16 %v1207, %v1206
      %v1220 = vpack.c.b16 %v1209, %v1208
      %v1221 = vpack.c.b16 %v1211, %v1210
      %v1222 = vpack.c.b16 %v1213, %v1212
      %v1223 = vpack.c.b16 %v1215, %v1214
      %v1240 = vunpack.c.l.b16 %v468
      %v1241 = vunpack.c.l.b16 %v469
      %v1242 = vunpack.c.l.b16 %v470
      %v1243 = vunpack.c.l.b16 %v471
      %v1244 = vunpack.c.l.b16 %v472
      %v1245 = vunpack.c.l.b16 %v473
      %v1246 = vunpack.c.l.b16 %v474
      %v1247 = vunpack.c.l.b16 %v475
      %v1248 = vunpack.c.l.b16 %v476
      %v1249 = vunpack.c.l.b16 %v477
      %v1250 = vunpack.c.l.b16 %v478
      %v1251 = vunpack.c.l.b16 %v479
      %v1252 = vunpack.c.l.b16 %v480
      %v1253 = vunpack.c.l.b16 %v481
      %v1254 = vunpack.c.l.b16 %v482
      %v1255 = vunpack.c.l.b16 %v483
      %v1256 = vpack.c.b16 %v1241, %v1240
      %v1257 = vpack.c.b16 %v1243, %v1242
      %v1258 = vpack.c.b16 %v1245, %v1244
      %v1259 = vpack.c.b16 %v1247, %v1246
      %v1260 = vpack.c.b16 %v1249, %v1248
      %v1261 = vpack.c.b16 %v1251, %v1250
      %v1262 = vpack.c.b16 %v1253, %v1252
      %v1263 = vpack.c.b16 %v1255, %v1254
      %v1265 = vsel %vm732, %v1216, 0
      %v1268 = vsel %vm732, %v1217, 0
      %v1271 = vsel %vm732, %v1218, 0
      %v1274 = vsel %vm732, %v1219, 0
      %v1277 = vsel %vm732, %v1220, 0
      %v1280 = vsel %vm732, %v1221, 0
      %v1283 = vsel %vm732, %v1222, 0
      %v1286 = vsel %vm732, %v1223, 0
      %v1289 = vsel %vm732, %v1256, 0
      %v1292 = vsel %vm732, %v1257, 0
      %v1295 = vsel %vm732, %v1258, 0
      %v1298 = vsel %vm732, %v1259, 0
      %v1301 = vsel %vm732, %v1260, 0
      %v1304 = vsel %vm732, %v1261, 0
      %v1307 = vsel %vm732, %v1262, 0
      %v1310 = vsel %vm732, %v1263, 0
      %1312 = vmatpush.bf16.xpose.msra.mxu0 %v1310
      %1313 = vmatpush.bf16.xpose.msra.mxu0 %v1307
      %1314 = vmatpush.bf16.xpose.msra.mxu0 %v1304
      %1315 = vmatpush.bf16.xpose.msra.mxu0 %v1301
      %1316 = vmatpush.bf16.xpose.msra.mxu0 %v1298
      %1317 = vmatpush.bf16.xpose.msra.mxu0 %v1295
      %1318 = vmatpush.bf16.xpose.msra.mxu0 %v1292
      %1319 = vmatpush.bf16.xpose.msra.mxu0 %v1289
      %1320 = vmatmul.bf16.gmra.mxu0 %v1265
      %v1321 = vpop.f32.mrf.mxu0
      %v1322 = vadd.f32 %v636, %v1321
      %v1323 = vpop.f32.mrf.mxu0
      %v1324 = vadd.f32 %v637, %v1323
      %1325 = vmatmul.bf16.gmra.mxu0 %v1268
      %v1326 = vpop.f32.mrf.mxu0
      %v1327 = vadd.f32 %v638, %v1326
      %v1328 = vpop.f32.mrf.mxu0
      %v1329 = vadd.f32 %v639, %v1328
      %1330 = vmatmul.bf16.gmra.mxu0 %v1271
      %v1331 = vpop.f32.mrf.mxu0
      %v1332 = vadd.f32 %v640, %v1331
      %v1333 = vpop.f32.mrf.mxu0
      %v1334 = vadd.f32 %v641, %v1333
      %1335 = vmatmul.bf16.gmra.mxu0 %v1274
      %v1336 = vpop.f32.mrf.mxu0
      %v1337 = vadd.f32 %v642, %v1336
      %v1338 = vpop.f32.mrf.mxu0
      %v1339 = vadd.f32 %v643, %v1338
      %1340 = vmatmul.bf16.gmra.mxu0 %v1277
      %v1341 = vpop.f32.mrf.mxu0
      %v1342 = vadd.f32 %v644, %v1341
      %v1343 = vpop.f32.mrf.mxu0
      %v1344 = vadd.f32 %v645, %v1343
      %1345 = vmatmul.bf16.gmra.mxu0 %v1280
      %v1346 = vpop.f32.mrf.mxu0
      %v1347 = vadd.f32 %v646, %v1346
      %v1348 = vpop.f32.mrf.mxu0
      %v1349 = vadd.f32 %v647, %v1348
      %1350 = vmatmul.bf16.gmra.mxu0 %v1283
      %v1351 = vpop.f32.mrf.mxu0
      %v1352 = vadd.f32 %v648, %v1351
      %v1353 = vpop.f32.mrf.mxu0
      %v1354 = vadd.f32 %v649, %v1353
      %1355 = vmatmul.bf16.gmra.mxu0 %v1286
      %v1356 = vpop.f32.mrf.mxu0
      %v1357 = vadd.f32 %v650, %v1356
      %v1358 = vpop.f32.mrf.mxu0
      %v1359 = vadd.f32 %v651, %v1358
      %1360 = vdwg.mxu0
      %1361 = vmax.xlane.f32.xlu0 %v791
      %v1362 = vpop.xlane.xlu0 %1361
      %1363 = vmax.xlane.f32.xlu0 %v793
      %v1364 = vpop.xlane.xlu0 %1363
      %1365 = vmax.xlane.f32.xlu0 %v796
      %v1366 = vpop.xlane.xlu0 %1365
      %1367 = vmax.xlane.f32.xlu0 %v798
      %v1368 = vpop.xlane.xlu0 %1367
      %1369 = vmax.xlane.f32.xlu0 %v801
      %v1370 = vpop.xlane.xlu0 %1369
      %1371 = vmax.xlane.f32.xlu0 %v803
      %v1372 = vpop.xlane.xlu0 %1371
      %1373 = vmax.xlane.f32.xlu0 %v806
      %v1374 = vpop.xlane.xlu0 %1373
      %1375 = vmax.xlane.f32.xlu0 %v808
      %v1376 = vpop.xlane.xlu0 %1375
      %1377 = vmax.xlane.f32.xlu0 %v811
      %v1378 = vpop.xlane.xlu0 %1377
      %1379 = vmax.xlane.f32.xlu0 %v813
      %v1380 = vpop.xlane.xlu0 %1379
      %1381 = vmax.xlane.f32.xlu0 %v816
      %v1382 = vpop.xlane.xlu0 %1381
      %1383 = vmax.xlane.f32.xlu0 %v818
      %v1384 = vpop.xlane.xlu0 %1383
      %1385 = vmax.xlane.f32.xlu0 %v821
      %v1386 = vpop.xlane.xlu0 %1385
      %1387 = vmax.xlane.f32.xlu0 %v823
      %v1388 = vpop.xlane.xlu0 %1387
      %1389 = vmax.xlane.f32.xlu0 %v826
      %v1390 = vpop.xlane.xlu0 %1389
      %1391 = vmax.xlane.f32.xlu0 %v828
      %v1392 = vpop.xlane.xlu0 %1391
      %1393 = vmax.xlane.f32.xlu0 %v968
      %v1394 = vpop.xlane.xlu0 %1393
      %1395 = vmax.xlane.f32.xlu0 %v970
      %v1396 = vpop.xlane.xlu0 %1395
      %1397 = vmax.xlane.f32.xlu0 %v973
      %v1398 = vpop.xlane.xlu0 %1397
      %1399 = vmax.xlane.f32.xlu0 %v975
      %v1400 = vpop.xlane.xlu0 %1399
      %1401 = vmax.xlane.f32.xlu0 %v978
      %v1402 = vpop.xlane.xlu0 %1401
      %1403 = vmax.xlane.f32.xlu0 %v980
      %v1404 = vpop.xlane.xlu0 %1403
      %1405 = vmax.xlane.f32.xlu0 %v983
      %v1406 = vpop.xlane.xlu0 %1405
      %1407 = vmax.xlane.f32.xlu0 %v985
      %v1408 = vpop.xlane.xlu0 %1407
      %1409 = vmax.xlane.f32.xlu0 %v988
      %v1410 = vpop.xlane.xlu0 %1409
      %1411 = vmax.xlane.f32.xlu0 %v990
      %v1412 = vpop.xlane.xlu0 %1411
      %1413 = vmax.xlane.f32.xlu0 %v993
      %v1414 = vpop.xlane.xlu0 %1413
      %1415 = vmax.xlane.f32.xlu0 %v995
      %v1416 = vpop.xlane.xlu0 %1415
      %1417 = vmax.xlane.f32.xlu0 %v998
      %v1418 = vpop.xlane.xlu0 %1417
      %1419 = vmax.xlane.f32.xlu0 %v1000
      %v1420 = vpop.xlane.xlu0 %1419
      %1421 = vmax.xlane.f32.xlu0 %v1003
      %v1422 = vpop.xlane.xlu0 %1421
      %1423 = vmax.xlane.f32.xlu0 %v1005
      %v1424 = vpop.xlane.xlu0 %1423
      %1425 = vmax.xlane.f32.xlu0 %v1145
      %v1426 = vpop.xlane.xlu0 %1425
      %1427 = vmax.xlane.f32.xlu0 %v1147
      %v1428 = vpop.xlane.xlu0 %1427
      %1429 = vmax.xlane.f32.xlu0 %v1150
      %v1430 = vpop.xlane.xlu0 %1429
      %1431 = vmax.xlane.f32.xlu0 %v1152
      %v1432 = vpop.xlane.xlu0 %1431
      %1433 = vmax.xlane.f32.xlu0 %v1155
      %v1434 = vpop.xlane.xlu0 %1433
      %1435 = vmax.xlane.f32.xlu0 %v1157
      %v1436 = vpop.xlane.xlu0 %1435
      %1437 = vmax.xlane.f32.xlu0 %v1160
      %v1438 = vpop.xlane.xlu0 %1437
      %1439 = vmax.xlane.f32.xlu0 %v1162
      %v1440 = vpop.xlane.xlu0 %1439
      %1441 = vmax.xlane.f32.xlu0 %v1165
      %v1442 = vpop.xlane.xlu0 %1441
      %1443 = vmax.xlane.f32.xlu0 %v1167
      %v1444 = vpop.xlane.xlu0 %1443
      %1445 = vmax.xlane.f32.xlu0 %v1170
      %v1446 = vpop.xlane.xlu0 %1445
      %1447 = vmax.xlane.f32.xlu0 %v1172
      %v1448 = vpop.xlane.xlu0 %1447
      %1449 = vmax.xlane.f32.xlu0 %v1175
      %v1450 = vpop.xlane.xlu0 %1449
      %1451 = vmax.xlane.f32.xlu0 %v1177
      %v1452 = vpop.xlane.xlu0 %1451
      %1453 = vmax.xlane.f32.xlu0 %v1180
      %v1454 = vpop.xlane.xlu0 %1453
      %1455 = vmax.xlane.f32.xlu0 %v1182
      %v1456 = vpop.xlane.xlu0 %1455
      %1457 = vmax.xlane.f32.xlu0 %v1322
      %v1458 = vpop.xlane.xlu0 %1457
      %1459 = vmax.xlane.f32.xlu0 %v1324
      %v1460 = vpop.xlane.xlu0 %1459
      %1461 = vmax.xlane.f32.xlu0 %v1327
      %v1462 = vpop.xlane.xlu0 %1461
      %1463 = vmax.xlane.f32.xlu0 %v1329
      %v1464 = vpop.xlane.xlu0 %1463
      %1465 = vmax.xlane.f32.xlu0 %v1332
      %v1466 = vpop.xlane.xlu0 %1465
      %1467 = vmax.xlane.f32.xlu0 %v1334
      %v1468 = vpop.xlane.xlu0 %1467
      %1469 = vmax.xlane.f32.xlu0 %v1337
      %v1470 = vpop.xlane.xlu0 %1469
      %1471 = vmax.xlane.f32.xlu0 %v1339
      %v1472 = vpop.xlane.xlu0 %1471
      %1473 = vmax.xlane.f32.xlu0 %v1342
      %v1474 = vpop.xlane.xlu0 %1473
      %1475 = vmax.xlane.f32.xlu0 %v1344
      %v1476 = vpop.xlane.xlu0 %1475
      %1477 = vmax.xlane.f32.xlu0 %v1347
      %v1478 = vpop.xlane.xlu0 %1477
      %1479 = vmax.xlane.f32.xlu0 %v1349
      %v1480 = vpop.xlane.xlu0 %1479
      %1481 = vmax.xlane.f32.xlu0 %v1352
      %v1482 = vpop.xlane.xlu0 %1481
      %1483 = vmax.xlane.f32.xlu0 %v1354
      %v1484 = vpop.xlane.xlu0 %1483
      %1485 = vmax.xlane.f32.xlu0 %v1357
      %v1486 = vpop.xlane.xlu0 %1485
      %1487 = vmax.xlane.f32.xlu0 %v1359
      %v1488 = vpop.xlane.xlu0 %1487
      %v1489 = vsub.f32 %v791, %v1362
      %v1490 = vsub.f32 %v793, %v1364
      %v1491 = vsub.f32 %v796, %v1366
      %v1492 = vsub.f32 %v798, %v1368
      %v1493 = vsub.f32 %v801, %v1370
      %v1494 = vsub.f32 %v803, %v1372
      %v1495 = vsub.f32 %v806, %v1374
      %v1496 = vsub.f32 %v808, %v1376
      %v1497 = vsub.f32 %v811, %v1378
      %v1498 = vsub.f32 %v813, %v1380
      %v1499 = vsub.f32 %v816, %v1382
      %v1500 = vsub.f32 %v818, %v1384
      %v1501 = vsub.f32 %v821, %v1386
      %v1502 = vsub.f32 %v823, %v1388
      %v1503 = vsub.f32 %v826, %v1390
      %v1504 = vsub.f32 %v828, %v1392
      %v1505 = vsub.f32 %v968, %v1394
      %v1506 = vsub.f32 %v970, %v1396
      %v1507 = vsub.f32 %v973, %v1398
      %v1508 = vsub.f32 %v975, %v1400
      %v1509 = vsub.f32 %v978, %v1402
      %v1510 = vsub.f32 %v980, %v1404
      %v1511 = vsub.f32 %v983, %v1406
      %v1512 = vsub.f32 %v985, %v1408
      %v1513 = vsub.f32 %v988, %v1410
      %v1514 = vsub.f32 %v990, %v1412
      %v1515 = vsub.f32 %v993, %v1414
      %v1516 = vsub.f32 %v995, %v1416
      %v1517 = vsub.f32 %v998, %v1418
      %v1518 = vsub.f32 %v1000, %v1420
      %v1519 = vsub.f32 %v1003, %v1422
      %v1520 = vsub.f32 %v1005, %v1424
      %v1521 = vsub.f32 %v1145, %v1426
      %v1522 = vsub.f32 %v1147, %v1428
      %v1523 = vsub.f32 %v1150, %v1430
      %v1524 = vsub.f32 %v1152, %v1432
      %v1525 = vsub.f32 %v1155, %v1434
      %v1526 = vsub.f32 %v1157, %v1436
      %v1527 = vsub.f32 %v1160, %v1438
      %v1528 = vsub.f32 %v1162, %v1440
      %v1529 = vsub.f32 %v1165, %v1442
      %v1530 = vsub.f32 %v1167, %v1444
      %v1531 = vsub.f32 %v1170, %v1446
      %v1532 = vsub.f32 %v1172, %v1448
      %v1533 = vsub.f32 %v1175, %v1450
      %v1534 = vsub.f32 %v1177, %v1452
      %v1535 = vsub.f32 %v1180, %v1454
      %v1536 = vsub.f32 %v1182, %v1456
      %v1537 = vsub.f32 %v1322, %v1458
      %v1538 = vsub.f32 %v1324, %v1460
      %v1539 = vsub.f32 %v1327, %v1462
      %v1540 = vsub.f32 %v1329, %v1464
      %v1541 = vsub.f32 %v1332, %v1466
      %v1542 = vsub.f32 %v1334, %v1468
      %v1543 = vsub.f32 %v1337, %v1470
      %v1544 = vsub.f32 %v1339, %v1472
      %v1545 = vsub.f32 %v1342, %v1474
      %v1546 = vsub.f32 %v1344, %v1476
      %v1547 = vsub.f32 %v1347, %v1478
      %v1548 = vsub.f32 %v1349, %v1480
      %v1549 = vsub.f32 %v1352, %v1482
      %v1550 = vsub.f32 %v1354, %v1484
      %v1551 = vsub.f32 %v1357, %v1486
      %v1552 = vsub.f32 %v1359, %v1488
      %v1553 = vmul.f32 %v1489, 1.442695
      %v1554 = vpow.pop %v1553
      %v1555 = vmul.f32 %v1490, 1.442695
      %v1556 = vpow.pop %v1555
      %v1557 = vmul.f32 %v1491, 1.442695
      %v1558 = vpow.pop %v1557
      %v1559 = vmul.f32 %v1492, 1.442695
      %v1560 = vpow.pop %v1559
      %v1561 = vmul.f32 %v1493, 1.442695
      %v1562 = vpow.pop %v1561
      %v1563 = vmul.f32 %v1494, 1.442695
      %v1564 = vpow.pop %v1563
      %v1565 = vmul.f32 %v1495, 1.442695
      %v1566 = vpow.pop %v1565
      %v1567 = vmul.f32 %v1496, 1.442695
      %v1568 = vpow.pop %v1567
      %v1569 = vmul.f32 %v1497, 1.442695
      %v1570 = vpow.pop %v1569
      %v1571 = vmul.f32 %v1498, 1.442695
      %v1572 = vpow.pop %v1571
      %v1573 = vmul.f32 %v1499, 1.442695
      %v1574 = vpow.pop %v1573
      %v1575 = vmul.f32 %v1500, 1.442695
      %v1576 = vpow.pop %v1575
      %v1577 = vmul.f32 %v1501, 1.442695
      %v1578 = vpow.pop %v1577
      %v1579 = vmul.f32 %v1502, 1.442695
      %v1580 = vpow.pop %v1579
      %v1581 = vmul.f32 %v1503, 1.442695
      %v1582 = vpow.pop %v1581
      %v1583 = vmul.f32 %v1504, 1.442695
      %v1584 = vpow.pop %v1583
      %v1585 = vmul.f32 %v1505, 1.442695
      %v1586 = vpow.pop %v1585
      %v1587 = vmul.f32 %v1506, 1.442695
      %v1588 = vpow.pop %v1587
      %v1589 = vmul.f32 %v1507, 1.442695
      %v1590 = vpow.pop %v1589
      %v1591 = vmul.f32 %v1508, 1.442695
      %v1592 = vpow.pop %v1591
      %v1593 = vmul.f32 %v1509, 1.442695
      %v1594 = vpow.pop %v1593
      %v1595 = vmul.f32 %v1510, 1.442695
      %v1596 = vpow.pop %v1595
      %v1597 = vmul.f32 %v1511, 1.442695
      %v1598 = vpow.pop %v1597
      %v1599 = vmul.f32 %v1512, 1.442695
      %v1600 = vpow.pop %v1599
      %v1601 = vmul.f32 %v1513, 1.442695
      %v1602 = vpow.pop %v1601
      %v1603 = vmul.f32 %v1514, 1.442695
      %v1604 = vpow.pop %v1603
      %v1605 = vmul.f32 %v1515, 1.442695
      %v1606 = vpow.pop %v1605
      %v1607 = vmul.f32 %v1516, 1.442695
      %v1608 = vpow.pop %v1607
      %v1609 = vmul.f32 %v1517, 1.442695
      %v1610 = vpow.pop %v1609
      %v1611 = vmul.f32 %v1518, 1.442695
      %v1612 = vpow.pop %v1611
      %v1613 = vmul.f32 %v1519, 1.442695
      %v1614 = vpow.pop %v1613
      %v1615 = vmul.f32 %v1520, 1.442695
      %v1616 = vpow.pop %v1615
      %v1617 = vmul.f32 %v1521, 1.442695
      %v1618 = vpow.pop %v1617
      %v1619 = vmul.f32 %v1522, 1.442695
      %v1620 = vpow.pop %v1619
      %v1621 = vmul.f32 %v1523, 1.442695
      %v1622 = vpow.pop %v1621
      %v1623 = vmul.f32 %v1524, 1.442695
      %v1624 = vpow.pop %v1623
      %v1625 = vmul.f32 %v1525, 1.442695
      %v1626 = vpow.pop %v1625
      %v1627 = vmul.f32 %v1526, 1.442695
      %v1628 = vpow.pop %v1627
      %v1629 = vmul.f32 %v1527, 1.442695
      %v1630 = vpow.pop %v1629
      %v1631 = vmul.f32 %v1528, 1.442695
      %v1632 = vpow.pop %v1631
      %v1633 = vmul.f32 %v1529, 1.442695
      %v1634 = vpow.pop %v1633
      %v1635 = vmul.f32 %v1530, 1.442695
      %v1636 = vpow.pop %v1635
      %v1637 = vmul.f32 %v1531, 1.442695
      %v1638 = vpow.pop %v1637
      %v1639 = vmul.f32 %v1532, 1.442695
      %v1640 = vpow.pop %v1639
      %v1641 = vmul.f32 %v1533, 1.442695
      %v1642 = vpow.pop %v1641
      %v1643 = vmul.f32 %v1534, 1.442695
      %v1644 = vpow.pop %v1643
      %v1645 = vmul.f32 %v1535, 1.442695
      %v1646 = vpow.pop %v1645
      %v1647 = vmul.f32 %v1536, 1.442695
      %v1648 = vpow.pop %v1647
      %v1649 = vmul.f32 %v1537, 1.442695
      %v1650 = vpow.pop %v1649
      %v1651 = vmul.f32 %v1538, 1.442695
      %v1652 = vpow.pop %v1651
      %v1653 = vmul.f32 %v1539, 1.442695
      %v1654 = vpow.pop %v1653
      %v1655 = vmul.f32 %v1540, 1.442695
      %v1656 = vpow.pop %v1655
      %v1657 = vmul.f32 %v1541, 1.442695
      %v1658 = vpow.pop %v1657
      %v1659 = vmul.f32 %v1542, 1.442695
      %v1660 = vpow.pop %v1659
      %v1661 = vmul.f32 %v1543, 1.442695
      %v1662 = vpow.pop %v1661
      %v1663 = vmul.f32 %v1544, 1.442695
      %v1664 = vpow.pop %v1663
      %v1665 = vmul.f32 %v1545, 1.442695
      %v1666 = vpow.pop %v1665
      %v1667 = vmul.f32 %v1546, 1.442695
      %v1668 = vpow.pop %v1667
      %v1669 = vmul.f32 %v1547, 1.442695
      %v1670 = vpow.pop %v1669
      %v1671 = vmul.f32 %v1548, 1.442695
      %v1672 = vpow.pop %v1671
      %v1673 = vmul.f32 %v1549, 1.442695
      %v1674 = vpow.pop %v1673
      %v1675 = vmul.f32 %v1550, 1.442695
      %v1676 = vpow.pop %v1675
      %v1677 = vmul.f32 %v1551, 1.442695
      %v1678 = vpow.pop %v1677
      %v1679 = vmul.f32 %v1552, 1.442695
      %v1680 = vpow.pop %v1679
      %1681 = vadd.xlane.f32.xlu0 %v1554
      %v1682 = vpop.xlane.xlu0 %1681
      %1683 = vadd.xlane.f32.xlu0 %v1556
      %v1684 = vpop.xlane.xlu0 %1683
      %1685 = vadd.xlane.f32.xlu0 %v1558
      %v1686 = vpop.xlane.xlu0 %1685
      %1687 = vadd.xlane.f32.xlu0 %v1560
      %v1688 = vpop.xlane.xlu0 %1687
      %1689 = vadd.xlane.f32.xlu0 %v1562
      %v1690 = vpop.xlane.xlu0 %1689
      %1691 = vadd.xlane.f32.xlu0 %v1564
      %v1692 = vpop.xlane.xlu0 %1691
      %1693 = vadd.xlane.f32.xlu0 %v1566
      %v1694 = vpop.xlane.xlu0 %1693
      %1695 = vadd.xlane.f32.xlu0 %v1568
      %v1696 = vpop.xlane.xlu0 %1695
      %1697 = vadd.xlane.f32.xlu0 %v1570
      %v1698 = vpop.xlane.xlu0 %1697
      %1699 = vadd.xlane.f32.xlu0 %v1572
      %v1700 = vpop.xlane.xlu0 %1699
      %1701 = vadd.xlane.f32.xlu0 %v1574
      %v1702 = vpop.xlane.xlu0 %1701
      %1703 = vadd.xlane.f32.xlu0 %v1576
      %v1704 = vpop.xlane.xlu0 %1703
      %1705 = vadd.xlane.f32.xlu0 %v1578
      %v1706 = vpop.xlane.xlu0 %1705
      %1707 = vadd.xlane.f32.xlu0 %v1580
      %v1708 = vpop.xlane.xlu0 %1707
      %1709 = vadd.xlane.f32.xlu0 %v1582
      %v1710 = vpop.xlane.xlu0 %1709
      %1711 = vadd.xlane.f32.xlu0 %v1584
      %v1712 = vpop.xlane.xlu0 %1711
      %1713 = vadd.xlane.f32.xlu0 %v1586
      %v1714 = vpop.xlane.xlu0 %1713
      %1715 = vadd.xlane.f32.xlu0 %v1588
      %v1716 = vpop.xlane.xlu0 %1715
      %1717 = vadd.xlane.f32.xlu0 %v1590
      %v1718 = vpop.xlane.xlu0 %1717
      %1719 = vadd.xlane.f32.xlu0 %v1592
      %v1720 = vpop.xlane.xlu0 %1719
      %1721 = vadd.xlane.f32.xlu0 %v1594
      %v1722 = vpop.xlane.xlu0 %1721
      %1723 = vadd.xlane.f32.xlu0 %v1596
      %v1724 = vpop.xlane.xlu0 %1723
      %1725 = vadd.xlane.f32.xlu0 %v1598
      %v1726 = vpop.xlane.xlu0 %1725
      %1727 = vadd.xlane.f32.xlu0 %v1600
      %v1728 = vpop.xlane.xlu0 %1727
      %1729 = vadd.xlane.f32.xlu0 %v1602
      %v1730 = vpop.xlane.xlu0 %1729
      %1731 = vadd.xlane.f32.xlu0 %v1604
      %v1732 = vpop.xlane.xlu0 %1731
      %1733 = vadd.xlane.f32.xlu0 %v1606
      %v1734 = vpop.xlane.xlu0 %1733
      %1735 = vadd.xlane.f32.xlu0 %v1608
      %v1736 = vpop.xlane.xlu0 %1735
      %1737 = vadd.xlane.f32.xlu0 %v1610
      %v1738 = vpop.xlane.xlu0 %1737
      %1739 = vadd.xlane.f32.xlu0 %v1612
      %v1740 = vpop.xlane.xlu0 %1739
      %1741 = vadd.xlane.f32.xlu0 %v1614
      %v1742 = vpop.xlane.xlu0 %1741
      %1743 = vadd.xlane.f32.xlu0 %v1616
      %v1744 = vpop.xlane.xlu0 %1743
      %1745 = vadd.xlane.f32.xlu0 %v1618
      %v1746 = vpop.xlane.xlu0 %1745
      %1747 = vadd.xlane.f32.xlu0 %v1620
      %v1748 = vpop.xlane.xlu0 %1747
      %1749 = vadd.xlane.f32.xlu0 %v1622
      %v1750 = vpop.xlane.xlu0 %1749
      %1751 = vadd.xlane.f32.xlu0 %v1624
      %v1752 = vpop.xlane.xlu0 %1751
      %1753 = vadd.xlane.f32.xlu0 %v1626
      %v1754 = vpop.xlane.xlu0 %1753
      %1755 = vadd.xlane.f32.xlu0 %v1628
      %v1756 = vpop.xlane.xlu0 %1755
      %1757 = vadd.xlane.f32.xlu0 %v1630
      %v1758 = vpop.xlane.xlu0 %1757
      %1759 = vadd.xlane.f32.xlu0 %v1632
      %v1760 = vpop.xlane.xlu0 %1759
      %1761 = vadd.xlane.f32.xlu0 %v1634
      %v1762 = vpop.xlane.xlu0 %1761
      %1763 = vadd.xlane.f32.xlu0 %v1636
      %v1764 = vpop.xlane.xlu0 %1763
      %1765 = vadd.xlane.f32.xlu0 %v1638
      %v1766 = vpop.xlane.xlu0 %1765
      %1767 = vadd.xlane.f32.xlu0 %v1640
      %v1768 = vpop.xlane.xlu0 %1767
      %1769 = vadd.xlane.f32.xlu0 %v1642
      %v1770 = vpop.xlane.xlu0 %1769
      %1771 = vadd.xlane.f32.xlu0 %v1644
      %v1772 = vpop.xlane.xlu0 %1771
      %1773 = vadd.xlane.f32.xlu0 %v1646
      %v1774 = vpop.xlane.xlu0 %1773
      %1775 = vadd.xlane.f32.xlu0 %v1648
      %v1776 = vpop.xlane.xlu0 %1775
      %1777 = vadd.xlane.f32.xlu0 %v1650
      %v1778 = vpop.xlane.xlu0 %1777
      %1779 = vadd.xlane.f32.xlu0 %v1652
      %v1780 = vpop.xlane.xlu0 %1779
      %1781 = vadd.xlane.f32.xlu0 %v1654
      %v1782 = vpop.xlane.xlu0 %1781
      %1783 = vadd.xlane.f32.xlu0 %v1656
      %v1784 = vpop.xlane.xlu0 %1783
      %1785 = vadd.xlane.f32.xlu0 %v1658
      %v1786 = vpop.xlane.xlu0 %1785
      %1787 = vadd.xlane.f32.xlu0 %v1660
      %v1788 = vpop.xlane.xlu0 %1787
      %1789 = vadd.xlane.f32.xlu0 %v1662
      %v1790 = vpop.xlane.xlu0 %1789
      %1791 = vadd.xlane.f32.xlu0 %v1664
      %v1792 = vpop.xlane.xlu0 %1791
      %1793 = vadd.xlane.f32.xlu0 %v1666
      %v1794 = vpop.xlane.xlu0 %1793
      %1795 = vadd.xlane.f32.xlu0 %v1668
      %v1796 = vpop.xlane.xlu0 %1795
      %1797 = vadd.xlane.f32.xlu0 %v1670
      %v1798 = vpop.xlane.xlu0 %1797
      %1799 = vadd.xlane.f32.xlu0 %v1672
      %v1800 = vpop.xlane.xlu0 %1799
      %1801 = vadd.xlane.f32.xlu0 %v1674
      %v1802 = vpop.xlane.xlu0 %1801
      %1803 = vadd.xlane.f32.xlu0 %v1676
      %v1804 = vpop.xlane.xlu0 %1803
      %1805 = vadd.xlane.f32.xlu0 %v1678
      %v1806 = vpop.xlane.xlu0 %1805
      %1807 = vadd.xlane.f32.xlu0 %v1680
      %v1808 = vpop.xlane.xlu0 %1807
      %v1809 = vpack.c.bf16 %v1554, %v1554
      %v1810 = vpack.c.bf16 %v1556, %v1556
      %v1811 = vpack.c.bf16 %v1558, %v1558
      %v1812 = vpack.c.bf16 %v1560, %v1560
      %v1813 = vpack.c.bf16 %v1562, %v1562
      %v1814 = vpack.c.bf16 %v1564, %v1564
      %v1815 = vpack.c.bf16 %v1566, %v1566
      %v1816 = vpack.c.bf16 %v1568, %v1568
      %v1817 = vpack.c.bf16 %v1570, %v1570
      %v1818 = vpack.c.bf16 %v1572, %v1572
      %v1819 = vpack.c.bf16 %v1574, %v1574
      %v1820 = vpack.c.bf16 %v1576, %v1576
      %v1821 = vpack.c.bf16 %v1578, %v1578
      %v1822 = vpack.c.bf16 %v1580, %v1580
      %v1823 = vpack.c.bf16 %v1582, %v1582
      %v1824 = vpack.c.bf16 %v1584, %v1584
      %v1825 = vpack.c.bf16 %v1586, %v1586
      %v1826 = vpack.c.bf16 %v1588, %v1588
      %v1827 = vpack.c.bf16 %v1590, %v1590
      %v1828 = vpack.c.bf16 %v1592, %v1592
      %v1829 = vpack.c.bf16 %v1594, %v1594
      %v1830 = vpack.c.bf16 %v1596, %v1596
      %v1831 = vpack.c.bf16 %v1598, %v1598
      %v1832 = vpack.c.bf16 %v1600, %v1600
      %v1833 = vpack.c.bf16 %v1602, %v1602
      %v1834 = vpack.c.bf16 %v1604, %v1604
      %v1835 = vpack.c.bf16 %v1606, %v1606
      %v1836 = vpack.c.bf16 %v1608, %v1608
      %v1837 = vpack.c.bf16 %v1610, %v1610
      %v1838 = vpack.c.bf16 %v1612, %v1612
      %v1839 = vpack.c.bf16 %v1614, %v1614
      %v1840 = vpack.c.bf16 %v1616, %v1616
      %v1841 = vpack.c.bf16 %v1618, %v1618
      %v1842 = vpack.c.bf16 %v1620, %v1620
      %v1843 = vpack.c.bf16 %v1622, %v1622
      %v1844 = vpack.c.bf16 %v1624, %v1624
      %v1845 = vpack.c.bf16 %v1626, %v1626
      %v1846 = vpack.c.bf16 %v1628, %v1628
      %v1847 = vpack.c.bf16 %v1630, %v1630
      %v1848 = vpack.c.bf16 %v1632, %v1632
      %v1849 = vpack.c.bf16 %v1634, %v1634
      %v1850 = vpack.c.bf16 %v1636, %v1636
      %v1851 = vpack.c.bf16 %v1638, %v1638
      %v1852 = vpack.c.bf16 %v1640, %v1640
      %v1853 = vpack.c.bf16 %v1642, %v1642
      %v1854 = vpack.c.bf16 %v1644, %v1644
      %v1855 = vpack.c.bf16 %v1646, %v1646
      %v1856 = vpack.c.bf16 %v1648, %v1648
      %v1857 = vpack.c.bf16 %v1650, %v1650
      %v1858 = vpack.c.bf16 %v1652, %v1652
      %v1859 = vpack.c.bf16 %v1654, %v1654
      %v1860 = vpack.c.bf16 %v1656, %v1656
      %v1861 = vpack.c.bf16 %v1658, %v1658
      %v1862 = vpack.c.bf16 %v1660, %v1660
      %v1863 = vpack.c.bf16 %v1662, %v1662
      %v1864 = vpack.c.bf16 %v1664, %v1664
      %v1865 = vpack.c.bf16 %v1666, %v1666
      %v1866 = vpack.c.bf16 %v1668, %v1668
      %v1867 = vpack.c.bf16 %v1670, %v1670
      %v1868 = vpack.c.bf16 %v1672, %v1672
      %v1869 = vpack.c.bf16 %v1674, %v1674
      %v1870 = vpack.c.bf16 %v1676, %v1676
      %v1871 = vpack.c.bf16 %v1678, %v1678
      %v1872 = vpack.c.bf16 %v1680, %v1680
      %v1873 = vld [vmem:[%s331] sm:$0xf]
      %v1874 = vld [vmem:[%s331 + $0x4] sm:$0xf]
      %v1875 = vld [vmem:[%s331 + $0x8] sm:$0xf]
      %v1876 = vld [vmem:[%s331 + $0xc] sm:$0xf]
      %v1877 = vld [vmem:[%s331 + $0x10] sm:$0xf]
      %v1878 = vld [vmem:[%s331 + $0x14] sm:$0xf]
      %v1879 = vld [vmem:[%s331 + $0x18] sm:$0xf]
      %v1880 = vld [vmem:[%s331 + $0x1c] sm:$0xf]
      %v1881 = vld [vmem:[%s331 + $0x20] sm:$0xf]
      %v1882 = vld [vmem:[%s331 + $0x24] sm:$0xf]
      %v1883 = vld [vmem:[%s331 + $0x28] sm:$0xf]
      %v1884 = vld [vmem:[%s331 + $0x2c] sm:$0xf]
      %v1885 = vld [vmem:[%s331 + $0x30] sm:$0xf]
      %v1886 = vld [vmem:[%s331 + $0x34] sm:$0xf]
      %v1887 = vld [vmem:[%s331 + $0x38] sm:$0xf]
      %v1888 = vld [vmem:[%s331 + $0x3c] sm:$0xf]
      %v1889 = vld [vmem:[%s331 + $0x40] sm:$0xf]
      %v1890 = vld [vmem:[%s331 + $0x44] sm:$0xf]
      %v1891 = vld [vmem:[%s331 + $0x48] sm:$0xf]
      %v1892 = vld [vmem:[%s331 + $0x4c] sm:$0xf]
      %v1893 = vld [vmem:[%s331 + $0x50] sm:$0xf]
      %v1894 = vld [vmem:[%s331 + $0x54] sm:$0xf]
      %v1895 = vld [vmem:[%s331 + $0x58] sm:$0xf]
      %v1896 = vld [vmem:[%s331 + $0x5c] sm:$0xf]
      %v1897 = vld [vmem:[%s331 + $0x60] sm:$0xf]
      %v1898 = vld [vmem:[%s331 + $0x64] sm:$0xf]
      %v1899 = vld [vmem:[%s331 + $0x68] sm:$0xf]
      %v1900 = vld [vmem:[%s331 + $0x6c] sm:$0xf]
      %v1901 = vld [vmem:[%s331 + $0x70] sm:$0xf]
      %v1902 = vld [vmem:[%s331 + $0x74] sm:$0xf]
      %v1903 = vld [vmem:[%s331 + $0x78] sm:$0xf]
      %v1904 = vld [vmem:[%s331 + $0x7c] sm:$0xf]
      %v1905 = vld [vmem:[%s331 + $0x80] sm:$0xf]
      %v1906 = vld [vmem:[%s331 + $0x84] sm:$0xf]
      %v1907 = vld [vmem:[%s331 + $0x88] sm:$0xf]
      %v1908 = vld [vmem:[%s331 + $0x8c] sm:$0xf]
      %v1909 = vld [vmem:[%s331 + $0x90] sm:$0xf]
      %v1910 = vld [vmem:[%s331 + $0x94] sm:$0xf]
      %v1911 = vld [vmem:[%s331 + $0x98] sm:$0xf]
      %v1912 = vld [vmem:[%s331 + $0x9c] sm:$0xf]
      %v1913 = vld [vmem:[%s331 + $0xa0] sm:$0xf]
      %v1914 = vld [vmem:[%s331 + $0xa4] sm:$0xf]
      %v1915 = vld [vmem:[%s331 + $0xa8] sm:$0xf]
      %v1916 = vld [vmem:[%s331 + $0xac] sm:$0xf]
      %v1917 = vld [vmem:[%s331 + $0xb0] sm:$0xf]
      %v1918 = vld [vmem:[%s331 + $0xb4] sm:$0xf]
      %v1919 = vld [vmem:[%s331 + $0xb8] sm:$0xf]
      %v1920 = vld [vmem:[%s331 + $0xbc] sm:$0xf]
      %v1921 = vld [vmem:[%s331 + $0xc0] sm:$0xf]
      %v1922 = vld [vmem:[%s331 + $0xc4] sm:$0xf]
      %v1923 = vld [vmem:[%s331 + $0xc8] sm:$0xf]
      %v1924 = vld [vmem:[%s331 + $0xcc] sm:$0xf]
      %v1925 = vld [vmem:[%s331 + $0xd0] sm:$0xf]
      %v1926 = vld [vmem:[%s331 + $0xd4] sm:$0xf]
      %v1927 = vld [vmem:[%s331 + $0xd8] sm:$0xf]
      %v1928 = vld [vmem:[%s331 + $0xdc] sm:$0xf]
      %v1929 = vld [vmem:[%s331 + $0xe0] sm:$0xf]
      %v1930 = vld [vmem:[%s331 + $0xe4] sm:$0xf]
      %v1931 = vld [vmem:[%s331 + $0xe8] sm:$0xf]
      %v1932 = vld [vmem:[%s331 + $0xec] sm:$0xf]
      %v1933 = vld [vmem:[%s331 + $0xf0] sm:$0xf]
      %v1934 = vld [vmem:[%s331 + $0xf4] sm:$0xf]
      %v1935 = vld [vmem:[%s331 + $0xf8] sm:$0xf]
      %v1936 = vld [vmem:[%s331 + $0xfc] sm:$0xf]
      %v1953 = vunpack.c.l.b16 %v1809
      %v1954 = vunpack.c.l.b16 %v1810
      %v1955 = vunpack.c.l.b16 %v1811
      %v1956 = vunpack.c.l.b16 %v1812
      %v1957 = vunpack.c.l.b16 %v1813
      %v1958 = vunpack.c.l.b16 %v1814
      %v1959 = vunpack.c.l.b16 %v1815
      %v1960 = vunpack.c.l.b16 %v1816
      %v1961 = vunpack.c.l.b16 %v1817
      %v1962 = vunpack.c.l.b16 %v1818
      %v1963 = vunpack.c.l.b16 %v1819
      %v1964 = vunpack.c.l.b16 %v1820
      %v1965 = vunpack.c.l.b16 %v1821
      %v1966 = vunpack.c.l.b16 %v1822
      %v1967 = vunpack.c.l.b16 %v1823
      %v1968 = vunpack.c.l.b16 %v1824
      %v1969 = vpack.c.b16 %v1954, %v1953
      %v1970 = vpack.c.b16 %v1956, %v1955
      %v1971 = vpack.c.b16 %v1958, %v1957
      %v1972 = vpack.c.b16 %v1960, %v1959
      %v1973 = vpack.c.b16 %v1962, %v1961
      %v1974 = vpack.c.b16 %v1964, %v1963
      %v1975 = vpack.c.b16 %v1966, %v1965
      %v1976 = vpack.c.b16 %v1968, %v1967
      %v2001 = vunpack.c.l.b16 %v1873
      %v2002 = vunpack.c.l.b16 %v1874
      %v2003 = vunpack.c.l.b16 %v1875
      %v2004 = vunpack.c.l.b16 %v1876
      %v2005 = vunpack.c.l.b16 %v1877
      %v2006 = vunpack.c.l.b16 %v1878
      %v2007 = vunpack.c.l.b16 %v1879
      %v2008 = vunpack.c.l.b16 %v1880
      %v2009 = vunpack.c.l.b16 %v1881
      %v2010 = vunpack.c.l.b16 %v1882
      %v2011 = vunpack.c.l.b16 %v1883
      %v2012 = vunpack.c.l.b16 %v1884
      %v2013 = vunpack.c.l.b16 %v1885
      %v2014 = vunpack.c.l.b16 %v1886
      %v2015 = vunpack.c.l.b16 %v1887
      %v2016 = vunpack.c.l.b16 %v1888
      %v2017 = vpack.c.b16 %v2002, %v2001
      %v2018 = vpack.c.b16 %v2004, %v2003
      %v2019 = vpack.c.b16 %v2006, %v2005
      %v2020 = vpack.c.b16 %v2008, %v2007
      %v2021 = vpack.c.b16 %v2010, %v2009
      %v2022 = vpack.c.b16 %v2012, %v2011
      %v2023 = vpack.c.b16 %v2014, %v2013
      %v2024 = vpack.c.b16 %v2016, %v2015
      %2033 = vmatpush.bf16.msra.mxu0 %v2024
      %2034 = vmatpush.bf16.msra.mxu0 %v2023
      %2035 = vmatpush.bf16.msra.mxu0 %v2022
      %2036 = vmatpush.bf16.msra.mxu0 %v2021
      %2037 = vmatpush.bf16.msra.mxu0 %v2020
      %2038 = vmatpush.bf16.msra.mxu0 %v2019
      %2039 = vmatpush.bf16.msra.mxu0 %v2018
      %2040 = vmatpush.bf16.msra.mxu0 %v2017
      %2041 = vmatmul.bf16.gmra.mxu0 %v1969
      %v2042 = vpop.f32.mrf.mxu0
      %v2043 = vadd.f32 0.0, %v2042
      %v2044 = vpop.f32.mrf.mxu0
      %v2045 = vadd.f32 0.0, %v2044
      %2046 = vmatmul.bf16.gmra.mxu0 %v1970
      %v2047 = vpop.f32.mrf.mxu0
      %v2048 = vadd.f32 0.0, %v2047
      %v2049 = vpop.f32.mrf.mxu0
      %v2050 = vadd.f32 0.0, %v2049
      %2051 = vmatmul.bf16.gmra.mxu0 %v1971
      %v2052 = vpop.f32.mrf.mxu0
      %v2053 = vadd.f32 0.0, %v2052
      %v2054 = vpop.f32.mrf.mxu0
      %v2055 = vadd.f32 0.0, %v2054
      %2056 = vmatmul.bf16.gmra.mxu0 %v1972
      %v2057 = vpop.f32.mrf.mxu0
      %v2058 = vadd.f32 0.0, %v2057
      %v2059 = vpop.f32.mrf.mxu0
      %v2060 = vadd.f32 0.0, %v2059
      %2061 = vmatmul.bf16.gmra.mxu0 %v1973
      %v2062 = vpop.f32.mrf.mxu0
      %v2063 = vadd.f32 0.0, %v2062
      %v2064 = vpop.f32.mrf.mxu0
      %v2065 = vadd.f32 0.0, %v2064
      %2066 = vmatmul.bf16.gmra.mxu0 %v1974
      %v2067 = vpop.f32.mrf.mxu0
      %v2068 = vadd.f32 0.0, %v2067
      %v2069 = vpop.f32.mrf.mxu0
      %v2070 = vadd.f32 0.0, %v2069
      %2071 = vmatmul.bf16.gmra.mxu0 %v1975
      %v2072 = vpop.f32.mrf.mxu0
      %v2073 = vadd.f32 0.0, %v2072
      %v2074 = vpop.f32.mrf.mxu0
      %v2075 = vadd.f32 0.0, %v2074
      %2076 = vmatmul.bf16.gmra.mxu0 %v1976
      %v2077 = vpop.f32.mrf.mxu0
      %v2078 = vadd.f32 0.0, %v2077
      %v2079 = vpop.f32.mrf.mxu0
      %v2080 = vadd.f32 0.0, %v2079
      %2081 = vdwg.mxu0
      %v2098 = vunpack.c.l.b16 %v1825
      %v2099 = vunpack.c.l.b16 %v1826
      %v2100 = vunpack.c.l.b16 %v1827
      %v2101 = vunpack.c.l.b16 %v1828
      %v2102 = vunpack.c.l.b16 %v1829
      %v2103 = vunpack.c.l.b16 %v1830
      %v2104 = vunpack.c.l.b16 %v1831
      %v2105 = vunpack.c.l.b16 %v1832
      %v2106 = vunpack.c.l.b16 %v1833
      %v2107 = vunpack.c.l.b16 %v1834
      %v2108 = vunpack.c.l.b16 %v1835
      %v2109 = vunpack.c.l.b16 %v1836
      %v2110 = vunpack.c.l.b16 %v1837
      %v2111 = vunpack.c.l.b16 %v1838
      %v2112 = vunpack.c.l.b16 %v1839
      %v2113 = vunpack.c.l.b16 %v1840
      %v2114 = vpack.c.b16 %v2099, %v2098
      %v2115 = vpack.c.b16 %v2101, %v2100
      %v2116 = vpack.c.b16 %v2103, %v2102
      %v2117 = vpack.c.b16 %v2105, %v2104
      %v2118 = vpack.c.b16 %v2107, %v2106
      %v2119 = vpack.c.b16 %v2109, %v2108
      %v2120 = vpack.c.b16 %v2111, %v2110
      %v2121 = vpack.c.b16 %v2113, %v2112
      %v2146 = vunpack.c.l.b16 %v1889
      %v2147 = vunpack.c.l.b16 %v1890
      %v2148 = vunpack.c.l.b16 %v1891
      %v2149 = vunpack.c.l.b16 %v1892
      %v2150 = vunpack.c.l.b16 %v1893
      %v2151 = vunpack.c.l.b16 %v1894
      %v2152 = vunpack.c.l.b16 %v1895
      %v2153 = vunpack.c.l.b16 %v1896
      %v2154 = vunpack.c.l.b16 %v1897
      %v2155 = vunpack.c.l.b16 %v1898
      %v2156 = vunpack.c.l.b16 %v1899
      %v2157 = vunpack.c.l.b16 %v1900
      %v2158 = vunpack.c.l.b16 %v1901
      %v2159 = vunpack.c.l.b16 %v1902
      %v2160 = vunpack.c.l.b16 %v1903
      %v2161 = vunpack.c.l.b16 %v1904
      %v2162 = vpack.c.b16 %v2147, %v2146
      %v2163 = vpack.c.b16 %v2149, %v2148
      %v2164 = vpack.c.b16 %v2151, %v2150
      %v2165 = vpack.c.b16 %v2153, %v2152
      %v2166 = vpack.c.b16 %v2155, %v2154
      %v2167 = vpack.c.b16 %v2157, %v2156
      %v2168 = vpack.c.b16 %v2159, %v2158
      %v2169 = vpack.c.b16 %v2161, %v2160
      %2178 = vmatpush.bf16.msra.mxu0 %v2169
      %2179 = vmatpush.bf16.msra.mxu0 %v2168
      %2180 = vmatpush.bf16.msra.mxu0 %v2167
      %2181 = vmatpush.bf16.msra.mxu0 %v2166
      %2182 = vmatpush.bf16.msra.mxu0 %v2165
      %2183 = vmatpush.bf16.msra.mxu0 %v2164
      %2184 = vmatpush.bf16.msra.mxu0 %v2163
      %2185 = vmatpush.bf16.msra.mxu0 %v2162
      %2186 = vmatmul.bf16.gmra.mxu0 %v2114
      %v2187 = vpop.f32.mrf.mxu0
      %v2188 = vadd.f32 0.0, %v2187
      %v2189 = vpop.f32.mrf.mxu0
      %v2190 = vadd.f32 0.0, %v2189
      %2191 = vmatmul.bf16.gmra.mxu0 %v2115
      %v2192 = vpop.f32.mrf.mxu0
      %v2193 = vadd.f32 0.0, %v2192
      %v2194 = vpop.f32.mrf.mxu0
      %v2195 = vadd.f32 0.0, %v2194
      %2196 = vmatmul.bf16.gmra.mxu0 %v2116
      %v2197 = vpop.f32.mrf.mxu0
      %v2198 = vadd.f32 0.0, %v2197
      %v2199 = vpop.f32.mrf.mxu0
      %v2200 = vadd.f32 0.0, %v2199
      %2201 = vmatmul.bf16.gmra.mxu0 %v2117
      %v2202 = vpop.f32.mrf.mxu0
      %v2203 = vadd.f32 0.0, %v2202
      %v2204 = vpop.f32.mrf.mxu0
      %v2205 = vadd.f32 0.0, %v2204
      %2206 = vmatmul.bf16.gmra.mxu0 %v2118
      %v2207 = vpop.f32.mrf.mxu0
      %v2208 = vadd.f32 0.0, %v2207
      %v2209 = vpop.f32.mrf.mxu0
      %v2210 = vadd.f32 0.0, %v2209
      %2211 = vmatmul.bf16.gmra.mxu0 %v2119
      %v2212 = vpop.f32.mrf.mxu0
      %v2213 = vadd.f32 0.0, %v2212
      %v2214 = vpop.f32.mrf.mxu0
      %v2215 = vadd.f32 0.0, %v2214
      %2216 = vmatmul.bf16.gmra.mxu0 %v2120
      %v2217 = vpop.f32.mrf.mxu0
      %v2218 = vadd.f32 0.0, %v2217
      %v2219 = vpop.f32.mrf.mxu0
      %v2220 = vadd.f32 0.0, %v2219
      %2221 = vmatmul.bf16.gmra.mxu0 %v2121
      %v2222 = vpop.f32.mrf.mxu0
      %v2223 = vadd.f32 0.0, %v2222
      %v2224 = vpop.f32.mrf.mxu0
      %v2225 = vadd.f32 0.0, %v2224
      %2226 = vdwg.mxu0
      %v2243 = vunpack.c.l.b16 %v1841
      %v2244 = vunpack.c.l.b16 %v1842
      %v2245 = vunpack.c.l.b16 %v1843
      %v2246 = vunpack.c.l.b16 %v1844
      %v2247 = vunpack.c.l.b16 %v1845
      %v2248 = vunpack.c.l.b16 %v1846
      %v2249 = vunpack.c.l.b16 %v1847
      %v2250 = vunpack.c.l.b16 %v1848
      %v2251 = vunpack.c.l.b16 %v1849
      %v2252 = vunpack.c.l.b16 %v1850
      %v2253 = vunpack.c.l.b16 %v1851
      %v2254 = vunpack.c.l.b16 %v1852
      %v2255 = vunpack.c.l.b16 %v1853
      %v2256 = vunpack.c.l.b16 %v1854
      %v2257 = vunpack.c.l.b16 %v1855
      %v2258 = vunpack.c.l.b16 %v1856
      %v2259 = vpack.c.b16 %v2244, %v2243
      %v2260 = vpack.c.b16 %v2246, %v2245
      %v2261 = vpack.c.b16 %v2248, %v2247
      %v2262 = vpack.c.b16 %v2250, %v2249
      %v2263 = vpack.c.b16 %v2252, %v2251
      %v2264 = vpack.c.b16 %v2254, %v2253
      %v2265 = vpack.c.b16 %v2256, %v2255
      %v2266 = vpack.c.b16 %v2258, %v2257
      %v2291 = vunpack.c.l.b16 %v1905
      %v2292 = vunpack.c.l.b16 %v1906
      %v2293 = vunpack.c.l.b16 %v1907
      %v2294 = vunpack.c.l.b16 %v1908
      %v2295 = vunpack.c.l.b16 %v1909
      %v2296 = vunpack.c.l.b16 %v1910
      %v2297 = vunpack.c.l.b16 %v1911
      %v2298 = vunpack.c.l.b16 %v1912
      %v2299 = vunpack.c.l.b16 %v1913
      %v2300 = vunpack.c.l.b16 %v1914
      %v2301 = vunpack.c.l.b16 %v1915
      %v2302 = vunpack.c.l.b16 %v1916
      %v2303 = vunpack.c.l.b16 %v1917
      %v2304 = vunpack.c.l.b16 %v1918
      %v2305 = vunpack.c.l.b16 %v1919
      %v2306 = vunpack.c.l.b16 %v1920
      %v2307 = vpack.c.b16 %v2292, %v2291
      %v2308 = vpack.c.b16 %v2294, %v2293
      %v2309 = vpack.c.b16 %v2296, %v2295
      %v2310 = vpack.c.b16 %v2298, %v2297
      %v2311 = vpack.c.b16 %v2300, %v2299
      %v2312 = vpack.c.b16 %v2302, %v2301
      %v2313 = vpack.c.b16 %v2304, %v2303
      %v2314 = vpack.c.b16 %v2306, %v2305
      %2323 = vmatpush.bf16.msra.mxu0 %v2314
      %2324 = vmatpush.bf16.msra.mxu0 %v2313
      %2325 = vmatpush.bf16.msra.mxu0 %v2312
      %2326 = vmatpush.bf16.msra.mxu0 %v2311
      %2327 = vmatpush.bf16.msra.mxu0 %v2310
      %2328 = vmatpush.bf16.msra.mxu0 %v2309
      %2329 = vmatpush.bf16.msra.mxu0 %v2308
      %2330 = vmatpush.bf16.msra.mxu0 %v2307
      %2331 = vmatmul.bf16.gmra.mxu0 %v2259
      %v2332 = vpop.f32.mrf.mxu0
      %v2333 = vadd.f32 0.0, %v2332
      %v2334 = vpop.f32.mrf.mxu0
      %v2335 = vadd.f32 0.0, %v2334
      %2336 = vmatmul.bf16.gmra.mxu0 %v2260
      %v2337 = vpop.f32.mrf.mxu0
      %v2338 = vadd.f32 0.0, %v2337
      %v2339 = vpop.f32.mrf.mxu0
      %v2340 = vadd.f32 0.0, %v2339
      %2341 = vmatmul.bf16.gmra.mxu0 %v2261
      %v2342 = vpop.f32.mrf.mxu0
      %v2343 = vadd.f32 0.0, %v2342
      %v2344 = vpop.f32.mrf.mxu0
      %v2345 = vadd.f32 0.0, %v2344
      %2346 = vmatmul.bf16.gmra.mxu0 %v2262
      %v2347 = vpop.f32.mrf.mxu0
      %v2348 = vadd.f32 0.0, %v2347
      %v2349 = vpop.f32.mrf.mxu0
      %v2350 = vadd.f32 0.0, %v2349
      %2351 = vmatmul.bf16.gmra.mxu0 %v2263
      %v2352 = vpop.f32.mrf.mxu0
      %v2353 = vadd.f32 0.0, %v2352
      %v2354 = vpop.f32.mrf.mxu0
      %v2355 = vadd.f32 0.0, %v2354
      %2356 = vmatmul.bf16.gmra.mxu0 %v2264
      %v2357 = vpop.f32.mrf.mxu0
      %v2358 = vadd.f32 0.0, %v2357
      %v2359 = vpop.f32.mrf.mxu0
      %v2360 = vadd.f32 0.0, %v2359
      %2361 = vmatmul.bf16.gmra.mxu0 %v2265
      %v2362 = vpop.f32.mrf.mxu0
      %v2363 = vadd.f32 0.0, %v2362
      %v2364 = vpop.f32.mrf.mxu0
      %v2365 = vadd.f32 0.0, %v2364
      %2366 = vmatmul.bf16.gmra.mxu0 %v2266
      %v2367 = vpop.f32.mrf.mxu0
      %v2368 = vadd.f32 0.0, %v2367
      %v2369 = vpop.f32.mrf.mxu0
      %v2370 = vadd.f32 0.0, %v2369
      %2371 = vdwg.mxu0
      %v2388 = vunpack.c.l.b16 %v1857
      %v2389 = vunpack.c.l.b16 %v1858
      %v2390 = vunpack.c.l.b16 %v1859
      %v2391 = vunpack.c.l.b16 %v1860
      %v2392 = vunpack.c.l.b16 %v1861
      %v2393 = vunpack.c.l.b16 %v1862
      %v2394 = vunpack.c.l.b16 %v1863
      %v2395 = vunpack.c.l.b16 %v1864
      %v2396 = vunpack.c.l.b16 %v1865
      %v2397 = vunpack.c.l.b16 %v1866
      %v2398 = vunpack.c.l.b16 %v1867
      %v2399 = vunpack.c.l.b16 %v1868
      %v2400 = vunpack.c.l.b16 %v1869
      %v2401 = vunpack.c.l.b16 %v1870
      %v2402 = vunpack.c.l.b16 %v1871
      %v2403 = vunpack.c.l.b16 %v1872
      %v2404 = vpack.c.b16 %v2389, %v2388
      %v2405 = vpack.c.b16 %v2391, %v2390
      %v2406 = vpack.c.b16 %v2393, %v2392
      %v2407 = vpack.c.b16 %v2395, %v2394
      %v2408 = vpack.c.b16 %v2397, %v2396
      %v2409 = vpack.c.b16 %v2399, %v2398
      %v2410 = vpack.c.b16 %v2401, %v2400
      %v2411 = vpack.c.b16 %v2403, %v2402
      %v2436 = vunpack.c.l.b16 %v1921
      %v2437 = vunpack.c.l.b16 %v1922
      %v2438 = vunpack.c.l.b16 %v1923
      %v2439 = vunpack.c.l.b16 %v1924
      %v2440 = vunpack.c.l.b16 %v1925
      %v2441 = vunpack.c.l.b16 %v1926
      %v2442 = vunpack.c.l.b16 %v1927
      %v2443 = vunpack.c.l.b16 %v1928
      %v2444 = vunpack.c.l.b16 %v1929
      %v2445 = vunpack.c.l.b16 %v1930
      %v2446 = vunpack.c.l.b16 %v1931
      %v2447 = vunpack.c.l.b16 %v1932
      %v2448 = vunpack.c.l.b16 %v1933
      %v2449 = vunpack.c.l.b16 %v1934
      %v2450 = vunpack.c.l.b16 %v1935
      %v2451 = vunpack.c.l.b16 %v1936
      %v2452 = vpack.c.b16 %v2437, %v2436
      %v2453 = vpack.c.b16 %v2439, %v2438
      %v2454 = vpack.c.b16 %v2441, %v2440
      %v2455 = vpack.c.b16 %v2443, %v2442
      %v2456 = vpack.c.b16 %v2445, %v2444
      %v2457 = vpack.c.b16 %v2447, %v2446
      %v2458 = vpack.c.b16 %v2449, %v2448
      %v2459 = vpack.c.b16 %v2451, %v2450
      %2468 = vmatpush.bf16.msra.mxu0 %v2459
      %2469 = vmatpush.bf16.msra.mxu0 %v2458
      %2470 = vmatpush.bf16.msra.mxu0 %v2457
      %2471 = vmatpush.bf16.msra.mxu0 %v2456
      %2472 = vmatpush.bf16.msra.mxu0 %v2455
      %2473 = vmatpush.bf16.msra.mxu0 %v2454
      %2474 = vmatpush.bf16.msra.mxu0 %v2453
      %2475 = vmatpush.bf16.msra.mxu0 %v2452
      %2476 = vmatmul.bf16.gmra.mxu0 %v2404
      %v2477 = vpop.f32.mrf.mxu0
      %v2478 = vadd.f32 0.0, %v2477
      %v2479 = vpop.f32.mrf.mxu0
      %v2480 = vadd.f32 0.0, %v2479
      %2481 = vmatmul.bf16.gmra.mxu0 %v2405
      %v2482 = vpop.f32.mrf.mxu0
      %v2483 = vadd.f32 0.0, %v2482
      %v2484 = vpop.f32.mrf.mxu0
      %v2485 = vadd.f32 0.0, %v2484
      %2486 = vmatmul.bf16.gmra.mxu0 %v2406
      %v2487 = vpop.f32.mrf.mxu0
      %v2488 = vadd.f32 0.0, %v2487
      %v2489 = vpop.f32.mrf.mxu0
      %v2490 = vadd.f32 0.0, %v2489
      %2491 = vmatmul.bf16.gmra.mxu0 %v2407
      %v2492 = vpop.f32.mrf.mxu0
      %v2493 = vadd.f32 0.0, %v2492
      %v2494 = vpop.f32.mrf.mxu0
      %v2495 = vadd.f32 0.0, %v2494
      %2496 = vmatmul.bf16.gmra.mxu0 %v2408
      %v2497 = vpop.f32.mrf.mxu0
      %v2498 = vadd.f32 0.0, %v2497
      %v2499 = vpop.f32.mrf.mxu0
      %v2500 = vadd.f32 0.0, %v2499
      %2501 = vmatmul.bf16.gmra.mxu0 %v2409
      %v2502 = vpop.f32.mrf.mxu0
      %v2503 = vadd.f32 0.0, %v2502
      %v2504 = vpop.f32.mrf.mxu0
      %v2505 = vadd.f32 0.0, %v2504
      %2506 = vmatmul.bf16.gmra.mxu0 %v2410
      %v2507 = vpop.f32.mrf.mxu0
      %v2508 = vadd.f32 0.0, %v2507
      %v2509 = vpop.f32.mrf.mxu0
      %v2510 = vadd.f32 0.0, %v2509
      %2511 = vmatmul.bf16.gmra.mxu0 %v2411
      %v2512 = vpop.f32.mrf.mxu0
      %v2513 = vadd.f32 0.0, %v2512
      %v2514 = vpop.f32.mrf.mxu0
      %v2515 = vadd.f32 0.0, %v2514
      %2516 = vdwg.mxu0
      %v2517 = vrcp.pop %v1682
      %v2518 = vrcp.pop %v1684
      %v2519 = vrcp.pop %v1686
      %v2520 = vrcp.pop %v1688
      %v2521 = vrcp.pop %v1690
      %v2522 = vrcp.pop %v1692
      %v2523 = vrcp.pop %v1694
      %v2524 = vrcp.pop %v1696
      %v2525 = vrcp.pop %v1698
      %v2526 = vrcp.pop %v1700
      %v2527 = vrcp.pop %v1702
      %v2528 = vrcp.pop %v1704
      %v2529 = vrcp.pop %v1706
      %v2530 = vrcp.pop %v1708
      %v2531 = vrcp.pop %v1710
      %v2532 = vrcp.pop %v1712
      %v2533 = vrcp.pop %v1714
      %v2534 = vrcp.pop %v1716
      %v2535 = vrcp.pop %v1718
      %v2536 = vrcp.pop %v1720
      %v2537 = vrcp.pop %v1722
      %v2538 = vrcp.pop %v1724
      %v2539 = vrcp.pop %v1726
      %v2540 = vrcp.pop %v1728
      %v2541 = vrcp.pop %v1730
      %v2542 = vrcp.pop %v1732
      %v2543 = vrcp.pop %v1734
      %v2544 = vrcp.pop %v1736
      %v2545 = vrcp.pop %v1738
      %v2546 = vrcp.pop %v1740
      %v2547 = vrcp.pop %v1742
      %v2548 = vrcp.pop %v1744
      %v2549 = vrcp.pop %v1746
      %v2550 = vrcp.pop %v1748
      %v2551 = vrcp.pop %v1750
      %v2552 = vrcp.pop %v1752
      %v2553 = vrcp.pop %v1754
      %v2554 = vrcp.pop %v1756
      %v2555 = vrcp.pop %v1758
      %v2556 = vrcp.pop %v1760
      %v2557 = vrcp.pop %v1762
      %v2558 = vrcp.pop %v1764
      %v2559 = vrcp.pop %v1766
      %v2560 = vrcp.pop %v1768
      %v2561 = vrcp.pop %v1770
      %v2562 = vrcp.pop %v1772
      %v2563 = vrcp.pop %v1774
      %v2564 = vrcp.pop %v1776
      %v2565 = vrcp.pop %v1778
      %v2566 = vrcp.pop %v1780
      %v2567 = vrcp.pop %v1782
      %v2568 = vrcp.pop %v1784
      %v2569 = vrcp.pop %v1786
      %v2570 = vrcp.pop %v1788
      %v2571 = vrcp.pop %v1790
      %v2572 = vrcp.pop %v1792
      %v2573 = vrcp.pop %v1794
      %v2574 = vrcp.pop %v1796
      %v2575 = vrcp.pop %v1798
      %v2576 = vrcp.pop %v1800
      %v2577 = vrcp.pop %v1802
      %v2578 = vrcp.pop %v1804
      %v2579 = vrcp.pop %v1806
      %v2580 = vrcp.pop %v1808
      %v2581 = vmul.f32 %v2043, %v2517
      %v2582 = vmul.f32 %v2045, %v2518
      %v2583 = vmul.f32 %v2048, %v2519
      %v2584 = vmul.f32 %v2050, %v2520
      %v2585 = vmul.f32 %v2053, %v2521
      %v2586 = vmul.f32 %v2055, %v2522
      %v2587 = vmul.f32 %v2058, %v2523
      %v2588 = vmul.f32 %v2060, %v2524
      %v2589 = vmul.f32 %v2063, %v2525
      %v2590 = vmul.f32 %v2065, %v2526
      %v2591 = vmul.f32 %v2068, %v2527
      %v2592 = vmul.f32 %v2070, %v2528
      %v2593 = vmul.f32 %v2073, %v2529
      %v2594 = vmul.f32 %v2075, %v2530
      %v2595 = vmul.f32 %v2078, %v2531
      %v2596 = vmul.f32 %v2080, %v2532
      %v2597 = vmul.f32 %v2188, %v2533
      %v2598 = vmul.f32 %v2190, %v2534
      %v2599 = vmul.f32 %v2193, %v2535
      %v2600 = vmul.f32 %v2195, %v2536
      %v2601 = vmul.f32 %v2198, %v2537
      %v2602 = vmul.f32 %v2200, %v2538
      %v2603 = vmul.f32 %v2203, %v2539
      %v2604 = vmul.f32 %v2205, %v2540
      %v2605 = vmul.f32 %v2208, %v2541
      %v2606 = vmul.f32 %v2210, %v2542
      %v2607 = vmul.f32 %v2213, %v2543
      %v2608 = vmul.f32 %v2215, %v2544
      %v2609 = vmul.f32 %v2218, %v2545
      %v2610 = vmul.f32 %v2220, %v2546
      %v2611 = vmul.f32 %v2223, %v2547
      %v2612 = vmul.f32 %v2225, %v2548
      %v2613 = vmul.f32 %v2333, %v2549
      %v2614 = vmul.f32 %v2335, %v2550
      %v2615 = vmul.f32 %v2338, %v2551
      %v2616 = vmul.f32 %v2340, %v2552
      %v2617 = vmul.f32 %v2343, %v2553
      %v2618 = vmul.f32 %v2345, %v2554
      %v2619 = vmul.f32 %v2348, %v2555
      %v2620 = vmul.f32 %v2350, %v2556
      %v2621 = vmul.f32 %v2353, %v2557
      %v2622 = vmul.f32 %v2355, %v2558
      %v2623 = vmul.f32 %v2358, %v2559
      %v2624 = vmul.f32 %v2360, %v2560
      %v2625 = vmul.f32 %v2363, %v2561
      %v2626 = vmul.f32 %v2365, %v2562
      %v2627 = vmul.f32 %v2368, %v2563
      %v2628 = vmul.f32 %v2370, %v2564
      %v2629 = vmul.f32 %v2478, %v2565
      %v2630 = vmul.f32 %v2480, %v2566
      %v2631 = vmul.f32 %v2483, %v2567
      %v2632 = vmul.f32 %v2485, %v2568
      %v2633 = vmul.f32 %v2488, %v2569
      %v2634 = vmul.f32 %v2490, %v2570
      %v2635 = vmul.f32 %v2493, %v2571
      %v2636 = vmul.f32 %v2495, %v2572
      %v2637 = vmul.f32 %v2498, %v2573
      %v2638 = vmul.f32 %v2500, %v2574
      %v2639 = vmul.f32 %v2503, %v2575
      %v2640 = vmul.f32 %v2505, %v2576
      %v2641 = vmul.f32 %v2508, %v2577
      %v2642 = vmul.f32 %v2510, %v2578
      %v2643 = vmul.f32 %v2513, %v2579
      %v2644 = vmul.f32 %v2515, %v2580
      %v2645 = vpack.c.bf16 %v2581, %v2581
      %v2646 = vpack.c.bf16 %v2582, %v2582
      %v2647 = vpack.c.bf16 %v2583, %v2583
      %v2648 = vpack.c.bf16 %v2584, %v2584
      %v2649 = vpack.c.bf16 %v2585, %v2585
      %v2650 = vpack.c.bf16 %v2586, %v2586
      %v2651 = vpack.c.bf16 %v2587, %v2587
      %v2652 = vpack.c.bf16 %v2588, %v2588
      %v2653 = vpack.c.bf16 %v2589, %v2589
      %v2654 = vpack.c.bf16 %v2590, %v2590
      %v2655 = vpack.c.bf16 %v2591, %v2591
      %v2656 = vpack.c.bf16 %v2592, %v2592
      %v2657 = vpack.c.bf16 %v2593, %v2593
      %v2658 = vpack.c.bf16 %v2594, %v2594
      %v2659 = vpack.c.bf16 %v2595, %v2595
      %v2660 = vpack.c.bf16 %v2596, %v2596
      %v2661 = vpack.c.bf16 %v2597, %v2597
      %v2662 = vpack.c.bf16 %v2598, %v2598
      %v2663 = vpack.c.bf16 %v2599, %v2599
      %v2664 = vpack.c.bf16 %v2600, %v2600
      %v2665 = vpack.c.bf16 %v2601, %v2601
      %v2666 = vpack.c.bf16 %v2602, %v2602
      %v2667 = vpack.c.bf16 %v2603, %v2603
      %v2668 = vpack.c.bf16 %v2604, %v2604
      %v2669 = vpack.c.bf16 %v2605, %v2605
      %v2670 = vpack.c.bf16 %v2606, %v2606
      %v2671 = vpack.c.bf16 %v2607, %v2607
      %v2672 = vpack.c.bf16 %v2608, %v2608
      %v2673 = vpack.c.bf16 %v2609, %v2609
      %v2674 = vpack.c.bf16 %v2610, %v2610
      %v2675 = vpack.c.bf16 %v2611, %v2611
      %v2676 = vpack.c.bf16 %v2612, %v2612
      %v2677 = vpack.c.bf16 %v2613, %v2613
      %v2678 = vpack.c.bf16 %v2614, %v2614
      %v2679 = vpack.c.bf16 %v2615, %v2615
      %v2680 = vpack.c.bf16 %v2616, %v2616
      %v2681 = vpack.c.bf16 %v2617, %v2617
      %v2682 = vpack.c.bf16 %v2618, %v2618
      %v2683 = vpack.c.bf16 %v2619, %v2619
      %v2684 = vpack.c.bf16 %v2620, %v2620
      %v2685 = vpack.c.bf16 %v2621, %v2621
      %v2686 = vpack.c.bf16 %v2622, %v2622
      %v2687 = vpack.c.bf16 %v2623, %v2623
      %v2688 = vpack.c.bf16 %v2624, %v2624
      %v2689 = vpack.c.bf16 %v2625, %v2625
      %v2690 = vpack.c.bf16 %v2626, %v2626
      %v2691 = vpack.c.bf16 %v2627, %v2627
      %v2692 = vpack.c.bf16 %v2628, %v2628
      %v2693 = vpack.c.bf16 %v2629, %v2629
      %v2694 = vpack.c.bf16 %v2630, %v2630
      %v2695 = vpack.c.bf16 %v2631, %v2631
      %v2696 = vpack.c.bf16 %v2632, %v2632
      %v2697 = vpack.c.bf16 %v2633, %v2633
      %v2698 = vpack.c.bf16 %v2634, %v2634
      %v2699 = vpack.c.bf16 %v2635, %v2635
      %v2700 = vpack.c.bf16 %v2636, %v2636
      %v2701 = vpack.c.bf16 %v2637, %v2637
      %v2702 = vpack.c.bf16 %v2638, %v2638
      %v2703 = vpack.c.bf16 %v2639, %v2639
      %v2704 = vpack.c.bf16 %v2640, %v2640
      %v2705 = vpack.c.bf16 %v2641, %v2641
      %v2706 = vpack.c.bf16 %v2642, %v2642
      %v2707 = vpack.c.bf16 %v2643, %v2643
      %v2708 = vpack.c.bf16 %v2644, %v2644
      %vm2709 = vcmask 322560
      %2710 = vst.msk [vmem:[%s354] sm:$0xf] %vm2709, %v2645
      %2711 = vst.msk [vmem:[%s354 + $0x8] sm:$0xf] %vm2709, %v2646
      %2712 = vst.msk [vmem:[%s354 + $0x10] sm:$0xf] %vm2709, %v2647
      %2713 = vst.msk [vmem:[%s354 + $0x18] sm:$0xf] %vm2709, %v2648
      %2714 = vst.msk [vmem:[%s354 + $0x20] sm:$0xf] %vm2709, %v2649
      %2715 = vst.msk [vmem:[%s354 + $0x28] sm:$0xf] %vm2709, %v2650
      %2716 = vst.msk [vmem:[%s354 + $0x30] sm:$0xf] %vm2709, %v2651
      %2717 = vst.msk [vmem:[%s354 + $0x38] sm:$0xf] %vm2709, %v2652
      %2718 = vst.msk [vmem:[%s354 + $0x40] sm:$0xf] %vm2709, %v2653
      %2719 = vst.msk [vmem:[%s354 + $0x48] sm:$0xf] %vm2709, %v2654
      %2720 = vst.msk [vmem:[%s354 + $0x50] sm:$0xf] %vm2709, %v2655
      %2721 = vst.msk [vmem:[%s354 + $0x58] sm:$0xf] %vm2709, %v2656
      %2722 = vst.msk [vmem:[%s354 + $0x60] sm:$0xf] %vm2709, %v2657
      %2723 = vst.msk [vmem:[%s354 + $0x68] sm:$0xf] %vm2709, %v2658
      %2724 = vst.msk [vmem:[%s354 + $0x70] sm:$0xf] %vm2709, %v2659
      %2725 = vst.msk [vmem:[%s354 + $0x78] sm:$0xf] %vm2709, %v2660
      %2742 = vrot.lane.b32.xlu0 %v2661, 40
      %v2743 = vpop.permute.xlu0 %2742
      %2744 = vrot.lane.b32.xlu0 %v2662, 40
      %v2745 = vpop.permute.xlu0 %2744
      %2746 = vrot.lane.b32.xlu0 %v2663, 40
      %v2747 = vpop.permute.xlu0 %2746
      %2748 = vrot.lane.b32.xlu0 %v2664, 40
      %v2749 = vpop.permute.xlu0 %2748
      %2750 = vrot.lane.b32.xlu0 %v2665, 40
      %v2751 = vpop.permute.xlu0 %2750
      %2752 = vrot.lane.b32.xlu0 %v2666, 40
      %v2753 = vpop.permute.xlu0 %2752
      %2754 = vrot.lane.b32.xlu0 %v2667, 40
      %v2755 = vpop.permute.xlu0 %2754
      %2756 = vrot.lane.b32.xlu0 %v2668, 40
      %v2757 = vpop.permute.xlu0 %2756
      %2758 = vrot.lane.b32.xlu0 %v2669, 40
      %v2759 = vpop.permute.xlu0 %2758
      %2760 = vrot.lane.b32.xlu0 %v2670, 40
      %v2761 = vpop.permute.xlu0 %2760
      %2762 = vrot.lane.b32.xlu0 %v2671, 40
      %v2763 = vpop.permute.xlu0 %2762
      %2764 = vrot.lane.b32.xlu0 %v2672, 40
      %v2765 = vpop.permute.xlu0 %2764
      %2766 = vrot.lane.b32.xlu0 %v2673, 40
      %v2767 = vpop.permute.xlu0 %2766
      %2768 = vrot.lane.b32.xlu0 %v2674, 40
      %v2769 = vpop.permute.xlu0 %2768
      %2770 = vrot.lane.b32.xlu0 %v2675, 40
      %v2771 = vpop.permute.xlu0 %2770
      %2772 = vrot.lane.b32.xlu0 %v2676, 40
      %v2773 = vpop.permute.xlu0 %2772
      %vm2790 = vcmask 650560
      %2791 = vst.msk [vmem:[%s354] sm:$0xf] %vm2790, %v2743
      %2792 = vst.msk [vmem:[%s354 + $0x8] sm:$0xf] %vm2790, %v2745
      %2793 = vst.msk [vmem:[%s354 + $0x10] sm:$0xf] %vm2790, %v2747
      %2794 = vst.msk [vmem:[%s354 + $0x18] sm:$0xf] %vm2790, %v2749
      %2795 = vst.msk [vmem:[%s354 + $0x20] sm:$0xf] %vm2790, %v2751
      %2796 = vst.msk [vmem:[%s354 + $0x28] sm:$0xf] %vm2790, %v2753
      %2797 = vst.msk [vmem:[%s354 + $0x30] sm:$0xf] %vm2790, %v2755
      %2798 = vst.msk [vmem:[%s354 + $0x38] sm:$0xf] %vm2790, %v2757
      %2799 = vst.msk [vmem:[%s354 + $0x40] sm:$0xf] %vm2790, %v2759
      %2800 = vst.msk [vmem:[%s354 + $0x48] sm:$0xf] %vm2790, %v2761
      %2801 = vst.msk [vmem:[%s354 + $0x50] sm:$0xf] %vm2790, %v2763
      %2802 = vst.msk [vmem:[%s354 + $0x58] sm:$0xf] %vm2790, %v2765
      %2803 = vst.msk [vmem:[%s354 + $0x60] sm:$0xf] %vm2790, %v2767
      %2804 = vst.msk [vmem:[%s354 + $0x68] sm:$0xf] %vm2790, %v2769
      %2805 = vst.msk [vmem:[%s354 + $0x70] sm:$0xf] %vm2790, %v2771
      %2806 = vst.msk [vmem:[%s354 + $0x78] sm:$0xf] %vm2790, %v2773
      %2823 = vrot.lane.b32.xlu0 %v2677, 80
      %v2824 = vpop.permute.xlu0 %2823
      %2825 = vrot.lane.b32.xlu0 %v2678, 80
      %v2826 = vpop.permute.xlu0 %2825
      %2827 = vrot.lane.b32.xlu0 %v2679, 80
      %v2828 = vpop.permute.xlu0 %2827
      %2829 = vrot.lane.b32.xlu0 %v2680, 80
      %v2830 = vpop.permute.xlu0 %2829
      %2831 = vrot.lane.b32.xlu0 %v2681, 80
      %v2832 = vpop.permute.xlu0 %2831
      %2833 = vrot.lane.b32.xlu0 %v2682, 80
      %v2834 = vpop.permute.xlu0 %2833
      %2835 = vrot.lane.b32.xlu0 %v2683, 80
      %v2836 = vpop.permute.xlu0 %2835
      %2837 = vrot.lane.b32.xlu0 %v2684, 80
      %v2838 = vpop.permute.xlu0 %2837
      %2839 = vrot.lane.b32.xlu0 %v2685, 80
      %v2840 = vpop.permute.xlu0 %2839
      %2841 = vrot.lane.b32.xlu0 %v2686, 80
      %v2842 = vpop.permute.xlu0 %2841
      %2843 = vrot.lane.b32.xlu0 %v2687, 80
      %v2844 = vpop.permute.xlu0 %2843
      %2845 = vrot.lane.b32.xlu0 %v2688, 80
      %v2846 = vpop.permute.xlu0 %2845
      %2847 = vrot.lane.b32.xlu0 %v2689, 80
      %v2848 = vpop.permute.xlu0 %2847
      %2849 = vrot.lane.b32.xlu0 %v2690, 80
      %v2850 = vpop.permute.xlu0 %2849
      %2851 = vrot.lane.b32.xlu0 %v2691, 80
      %v2852 = vpop.permute.xlu0 %2851
      %2853 = vrot.lane.b32.xlu0 %v2692, 80
      %v2854 = vpop.permute.xlu0 %2853
      %vm2871 = vcmask 978560
      %2872 = vst.msk [vmem:[%s354] sm:$0xf] %vm2871, %v2824
      %2873 = vst.msk [vmem:[%s354 + $0x8] sm:$0xf] %vm2871, %v2826
      %2874 = vst.msk [vmem:[%s354 + $0x10] sm:$0xf] %vm2871, %v2828
      %2875 = vst.msk [vmem:[%s354 + $0x18] sm:$0xf] %vm2871, %v2830
      %2876 = vst.msk [vmem:[%s354 + $0x20] sm:$0xf] %vm2871, %v2832
      %2877 = vst.msk [vmem:[%s354 + $0x28] sm:$0xf] %vm2871, %v2834
      %2878 = vst.msk [vmem:[%s354 + $0x30] sm:$0xf] %vm2871, %v2836
      %2879 = vst.msk [vmem:[%s354 + $0x38] sm:$0xf] %vm2871, %v2838
      %2880 = vst.msk [vmem:[%s354 + $0x40] sm:$0xf] %vm2871, %v2840
      %2881 = vst.msk [vmem:[%s354 + $0x48] sm:$0xf] %vm2871, %v2842
      %2882 = vst.msk [vmem:[%s354 + $0x50] sm:$0xf] %vm2871, %v2844
      %2883 = vst.msk [vmem:[%s354 + $0x58] sm:$0xf] %vm2871, %v2846
      %2884 = vst.msk [vmem:[%s354 + $0x60] sm:$0xf] %vm2871, %v2848
      %2885 = vst.msk [vmem:[%s354 + $0x68] sm:$0xf] %vm2871, %v2850
      %2886 = vst.msk [vmem:[%s354 + $0x70] sm:$0xf] %vm2871, %v2852
      %2887 = vst.msk [vmem:[%s354 + $0x78] sm:$0xf] %vm2871, %v2854
      %2904 = vrot.lane.b32.xlu0 %v2693, 120
      %v2905 = vpop.permute.xlu0 %2904
      %2906 = vrot.lane.b32.xlu0 %v2694, 120
      %v2907 = vpop.permute.xlu0 %2906
      %2908 = vrot.lane.b32.xlu0 %v2695, 120
      %v2909 = vpop.permute.xlu0 %2908
      %2910 = vrot.lane.b32.xlu0 %v2696, 120
      %v2911 = vpop.permute.xlu0 %2910
      %2912 = vrot.lane.b32.xlu0 %v2697, 120
      %v2913 = vpop.permute.xlu0 %2912
      %2914 = vrot.lane.b32.xlu0 %v2698, 120
      %v2915 = vpop.permute.xlu0 %2914
      %2916 = vrot.lane.b32.xlu0 %v2699, 120
      %v2917 = vpop.permute.xlu0 %2916
      %2918 = vrot.lane.b32.xlu0 %v2700, 120
      %v2919 = vpop.permute.xlu0 %2918
      %2920 = vrot.lane.b32.xlu0 %v2701, 120
      %v2921 = vpop.permute.xlu0 %2920
      %2922 = vrot.lane.b32.xlu0 %v2702, 120
      %v2923 = vpop.permute.xlu0 %2922
      %2924 = vrot.lane.b32.xlu0 %v2703, 120
      %v2925 = vpop.permute.xlu0 %2924
      %2926 = vrot.lane.b32.xlu0 %v2704, 120
      %v2927 = vpop.permute.xlu0 %2926
      %2928 = vrot.lane.b32.xlu0 %v2705, 120
      %v2929 = vpop.permute.xlu0 %2928
      %2930 = vrot.lane.b32.xlu0 %v2706, 120
      %v2931 = vpop.permute.xlu0 %2930
      %2932 = vrot.lane.b32.xlu0 %v2707, 120
      %v2933 = vpop.permute.xlu0 %2932
      %2934 = vrot.lane.b32.xlu0 %v2708, 120
      %v2935 = vpop.permute.xlu0 %2934
      %v2936 = vrot.slane %v2905, 4
      %v2937 = vrot.slane %v2907, 4
      %v2938 = vrot.slane %v2909, 4
      %v2939 = vrot.slane %v2911, 4
      %v2940 = vrot.slane %v2913, 4
      %v2941 = vrot.slane %v2915, 4
      %v2942 = vrot.slane %v2917, 4
      %v2943 = vrot.slane %v2919, 4
      %v2944 = vrot.slane %v2921, 4
      %v2945 = vrot.slane %v2923, 4
      %v2946 = vrot.slane %v2925, 4
      %v2947 = vrot.slane %v2927, 4
      %v2948 = vrot.slane %v2929, 4
      %v2949 = vrot.slane %v2931, 4
      %v2950 = vrot.slane %v2933, 4
      %v2951 = vrot.slane %v2935, 4
      %vm2952 = vcmask 982016
      %v2953 = vsel %vm2952, %v2936, %v2905
      %v2954 = vsel %vm2952, %v2937, %v2907
      %v2955 = vsel %vm2952, %v2938, %v2909
      %v2956 = vsel %vm2952, %v2939, %v2911
      %v2957 = vsel %vm2952, %v2940, %v2913
      %v2958 = vsel %vm2952, %v2941, %v2915
      %v2959 = vsel %vm2952, %v2942, %v2917
      %v2960 = vsel %vm2952, %v2943, %v2919
      %v2961 = vsel %vm2952, %v2944, %v2921
      %v2962 = vsel %vm2952, %v2945, %v2923
      %v2963 = vsel %vm2952, %v2946, %v2925
      %v2964 = vsel %vm2952, %v2947, %v2927
      %v2965 = vsel %vm2952, %v2948, %v2929
      %v2966 = vsel %vm2952, %v2949, %v2931
      %v2967 = vsel %vm2952, %v2950, %v2933
      %v2968 = vsel %vm2952, %v2951, %v2935
      %vm2985 = vcmask 1044416
      %vm2986 = vcmask 261124
      %vm2987 = vmor %vm2986, %vm2985
      %2988 = vst.msk [vmem:[%s354] sm:$0xff] %vm2987, %v2953
      %2989 = vst.msk [vmem:[%s354 + $0x8] sm:$0xff] %vm2987, %v2954
      %2990 = vst.msk [vmem:[%s354 + $0x10] sm:$0xff] %vm2987, %v2955
      %2991 = vst.msk [vmem:[%s354 + $0x18] sm:$0xff] %vm2987, %v2956
      %2992 = vst.msk [vmem:[%s354 + $0x20] sm:$0xff] %vm2987, %v2957
      %2993 = vst.msk [vmem:[%s354 + $0x28] sm:$0xff] %vm2987, %v2958
      %2994 = vst.msk [vmem:[%s354 + $0x30] sm:$0xff] %vm2987, %v2959
      %2995 = vst.msk [vmem:[%s354 + $0x38] sm:$0xff] %vm2987, %v2960
      %2996 = vst.msk [vmem:[%s354 + $0x40] sm:$0xff] %vm2987, %v2961
      %2997 = vst.msk [vmem:[%s354 + $0x48] sm:$0xff] %vm2987, %v2962
      %2998 = vst.msk [vmem:[%s354 + $0x50] sm:$0xff] %vm2987, %v2963
      %2999 = vst.msk [vmem:[%s354 + $0x58] sm:$0xff] %vm2987, %v2964
      %3000 = vst.msk [vmem:[%s354 + $0x60] sm:$0xff] %vm2987, %v2965
      %3001 = vst.msk [vmem:[%s354 + $0x68] sm:$0xff] %vm2987, %v2966
      %3002 = vst.msk [vmem:[%s354 + $0x70] sm:$0xff] %vm2987, %v2967
      %3003 = vst.msk [vmem:[%s354 + $0x78] sm:$0xff] %vm2987, %v2968
      %s3004 = smul.u32 16, %s21
      %p3005 = scmp.lt.s32.totalorder %s20, 1
      %s3006 = scalar_select %p3005, %s20, 1
      %p3007 = scmp.lt.s32.totalorder %s3004, 15
      %s3008 = scalar_select %p3007, %s3004, 15
      %s3009 = smul.addr %s3008, 2
      %s3010 = smul.addr %s3006, 32
      %s3011 = sadd.s32 %s3009, %s3010
      %s3012 = smul.addr %s3011, 4
      %s3013 = scalar_lea.vmem %s5, %s3012
      // Predicated region
      $region41: #{tpu_custom_call.1} parent=39 // pred_check
        %p3014 = pneg %p182
      $region42: #{tpu_custom_call.1} parent=39 // pred_check_branch
        %3016 = sbr.rel (%p3014) target = $region44
      $region43: #{tpu_custom_call.1} parent=39 // pred_region
        %s3017 = smul.u32 16, %s21
      $region44: #{tpu_custom_call.1} parent=39 // pred_fallthru
        _
    $region40: #{tpu_custom_call.1} parent=5 // pred_fallthru
      _
    %p3018 = scmp.le.s32.totalorder 2, %s11
    // Predicated region
    $region45: #{tpu_custom_call.1} parent=5 // pred_check
      %p3019 = pneg %p3018
    $region46: #{tpu_custom_call.1} parent=5 // pred_check_branch
      %3021 = sbr.rel (%p3019) target = $region48
    $region47: #{tpu_custom_call.1} parent=5 // pred_region
      %s3022 = ssub.s32 %s11, 2
      // Predicated region
      $region49: #{tpu_custom_call.1} parent=47 // pred_check
        %p3023 = pneg %p188
      $region50: #{tpu_custom_call.1} parent=47 // pred_check_branch
        %3025 = sbr.rel (%p3023) target = $region52
      $region51: #{tpu_custom_call.1} parent=47 // pred_region
        %s3026 = smul.u32 16, %s23
        %p3027 = scmp.lt.s32.totalorder %s22, 1
        %s3028 = scalar_select %p3027, %s22, 1
        %p3029 = scmp.lt.s32.totalorder %s3026, 15
        %s3030 = scalar_select %p3029, %s3026, 15
        %s3031 = smul.addr %s3030, 2
        %s3032 = smul.addr %s3028, 32
        %s3033 = sadd.s32 %s3031, %s3032
        %s3034 = smul.addr %s3033, 4
        %s3035 = scalar_lea.vmem %s5, %s3034
      $region52: #{tpu_custom_call.1} parent=47 // pred_fallthru
        _
    $region48: #{tpu_custom_call.1} parent=5 // pred_fallthru
      _
  $region6: #{tpu_custom_call.1} parent=0 // loop_footer
    %s15 = sadd.s32 1, %s11
  $region7: #{tpu_custom_call.1} parent=0 // loop_footer_branch
    %10 = sbr.rel target = $region3
  $region8: #{tpu_custom_call.1} parent=0 // loop_exit
    _

</llo_original>
